<compile_context>
chip_gen: v7x
topology: tpu7x:2x2x1
jax: 0.10.0
libtpu: 0.0.40
codegen_flags: <defaults>
</compile_context>

<pallas_src>
import jax
import jax.numpy as jnp
from jax import lax
from jax.experimental import pallas as pl
from jax.experimental.pallas import tpu as pltpu


_LANE_CHUNK = 2048                       # in-kernel dot width (multiple of 128)
_VMEM_STEP_BUDGET = 6 * 1024 * 1024      # bytes of (x-block + out-block) per grid step
_VMEM_LIMIT_BYTES = 32 * 1024 * 1024     # safe on v5e/v6e (128 MiB) and v7x (64 MiB)


def _precode_kernel(w_ref, x_ref, o_ref):
    # w_ref : (1, 2A, 2L)        stacked real precoding matrix for this tx
    # x_ref : (G, 1, 2L, Ft)     [real layers ; imag layers] for G batch items
    # o_ref : (G, 1, 2A, Ft)     [real ports  ; imag ports ]
    w = w_ref[0]                             # (2A, 2L), tiny
    g_count = x_ref.shape[0]
    f_total = x_ref.shape[-1]
    for g in range(g_count):                 # static unroll over grouped batch items
        start = 0
        while start < f_total:               # static unroll over 128-aligned lane chunks
            width = min(_LANE_CHUNK, f_total - start)
            xs = x_ref[g, 0, :, pl.ds(start, width)]          # (2L, width)
            o_ref[g, 0, :, pl.ds(start, width)] = jnp.dot(
                w, xs, preferred_element_type=jnp.float32)
            start += width


@jax.jit
def pusch_precode(x, w):
    """x: [B, T, L, S, C] complex64, w: [T, A, L] complex64 -> [B, T, A, S, C]."""
    B, T, L, S, C = x.shape
    Tw, A, Lw = w.shape
    assert T == Tw and L == Lw
    F = S * C

    # ---- input: free reshape + ONE fused real/imag stacking pass ----------
    xf = x.reshape(B, T, L, F)                                # free (contiguous)
    x2 = jnp.concatenate(
        [jnp.real(xf).astype(jnp.float32), jnp.imag(xf).astype(jnp.float32)],
        axis=2)                                               # [B, T, 2L, F]

    # Stacked real precoding matrices: [[wr, -wi], [wi, wr]] -> [T, 2A, 2L].
    wr = jnp.real(w).astype(jnp.float32)
    wi = jnp.imag(w).astype(jnp.float32)
    w2 = jnp.concatenate(
        [jnp.concatenate([wr, -wi], axis=-1),
         jnp.concatenate([wi, wr], axis=-1)],
        axis=-2)

    # ---- tiling: whole-F lane tiles when they fit the per-step budget -----
    per_lane_bytes = (2 * L + 2 * A) * 4                      # x + out bytes per lane per (b,t)
    if F * per_lane_bytes <= _VMEM_STEP_BUDGET:
        tile_f = F                                            # block dim == array dim: always legal
    else:
        tile_f = max(128, (_VMEM_STEP_BUDGET // (per_lane_bytes * 128)) * 128)
    nf = -(-F // tile_f)                                      # ragged last block is masked by Pallas

    # Group several batch items per step to amortize the ~0.35us/step pipeline
    # overhead, but keep >= 2 grid steps so both v7x TensorCores get work.
    G = 1
    for g in range(1, B + 1):
        if B % g:
            continue
        if g * tile_f * per_lane_bytes > _VMEM_STEP_BUDGET:
            break
        if (B // g) * T * nf < 2 and B * T * nf >= 2:
            continue
        G = g

    grid = (T, B // G, nf)                                    # t slowest -> w block reused

    w_spec = pl.BlockSpec((1, 2 * A, 2 * L), lambda t, b, f: (t, 0, 0))
    x_spec = pl.BlockSpec((G, 1, 2 * L, tile_f), lambda t, b, f: (b, t, 0, f))
    o_spec = pl.BlockSpec((G, 1, 2 * A, tile_f), lambda t, b, f: (b, t, 0, f))

    out = pl.pallas_call(
        _precode_kernel,
        out_shape=jax.ShapeDtypeStruct((B, T, 2 * A, F), jnp.float32),
        grid_spec=pltpu.PrefetchScalarGridSpec(
            num_scalar_prefetch=0,
            grid=grid,
            in_specs=[w_spec, x_spec],
            out_specs=o_spec,
        ),
        compiler_params=pltpu.CompilerParams(
            dimension_semantics=("parallel", "parallel", "parallel"),
            vmem_limit_bytes=_VMEM_LIMIT_BYTES,
        ),
    )(w2, x2)

    # ---- output: ONE fused combine pass, then free reshape ----------------
    z = lax.complex(out[:, :, :A, :], out[:, :, A:, :])       # [B, T, A, F] complex64
    return z.reshape(B, T, A, S, C)


def _reference(x, w):
    # out[b,t,a,s,c] = sum_l w[t,a,l] * x[b,t,l,s,c]
    return jnp.einsum("tal,btlsc->btasc", w, x)


if __name__ == "__main__":
    # Small but layout-realistic shapes (14 OFDM symbols, 2C not a toy width).
    B = 2            # batch_size
    T = 2            # num_tx
    L = 2            # num_layers
    A = 4            # num_antenna_ports
    S = 14           # num_symbols_per_slot
    C = 192          # num_subcarriers  (F = S*C = 2688)

    key = jax.random.PRNGKey(0)
    k1, k2, k3, k4 = jax.random.split(key, 4)

    # Deterministic precoding matrices, one per transmitter: [T, A, L] complex64.
    w = (jax.random.normal(k1, (T, A, L), dtype=jnp.float32)
         + 1j * jax.random.normal(k2, (T, A, L), dtype=jnp.float32)).astype(jnp.complex64)

    # Resource grid: [B, T, L, S, C] complex64.
    x = (jax.random.normal(k3, (B, T, L, S, C), dtype=jnp.float32)
         + 1j * jax.random.normal(k4, (B, T, L, S, C), dtype=jnp.float32)).astype(jnp.complex64)

    out = pusch_precode(x, w)
    out = jax.block_until_ready(out)

    ref = _reference(x, w)
    assert out.shape == (B, T, A, S, C)
    assert out.dtype == jnp.complex64
    assert jnp.allclose(out, ref, atol=1e-4, rtol=1e-4), "mismatch vs reference"

    print("KERNEL_OK")
</pallas_src>

<mosaic_0001>
module attributes {stable_mosaic.version = 11 : i64} {
  func.func @_precode_kernel(%arg0: i32, %arg1: i32, %arg2: i32, %arg3: memref<1x8x4xf32, #tpu.memory_space<vmem>>, %arg4: memref<2x1x4x2688xf32, #tpu.memory_space<vmem>>, %arg5: memref<2x1x8x2688xf32, #tpu.memory_space<vmem>>) attributes {dimension_semantics = [#tpu.dimension_semantics<parallel>, #tpu.dimension_semantics<parallel>, #tpu.dimension_semantics<parallel>], iteration_bounds = array<i64: 2, 1, 1>, scalar_prefetch = 0 : i64, scratch_operands = 0 : i64, tpu.core_type = #tpu.core_type<tc>, window_params = [{transform_indices = @transform_0, window_bounds = array<i64: 1, 8, 4>}, {transform_indices = @transform_1, window_bounds = array<i64: 2, 1, 4, 2688>}, {transform_indices = @transform_2, window_bounds = array<i64: 2, 1, 8, 2688>}]} {
    %c0 = arith.constant 0 : index
    %c0_0 = arith.constant 0 : index
    %c0_1 = arith.constant 0 : index
    %0 = vector.load %arg3[%c0, %c0_0, %c0_1] : memref<1x8x4xf32, #tpu.memory_space<vmem>>, vector<1x8x4xf32>
    %1 = vector.shape_cast %0 : vector<1x8x4xf32> to vector<8x4xf32>
    %c0_2 = arith.constant 0 : index
    %c0_3 = arith.constant 0 : index
    %c0_4 = arith.constant 0 : index
    %c0_5 = arith.constant 0 : index
    %2 = vector.load %arg4[%c0_2, %c0_3, %c0_4, %c0_5] : memref<2x1x4x2688xf32, #tpu.memory_space<vmem>>, vector<1x1x4x2048xf32>
    %3 = vector.shape_cast %2 : vector<1x1x4x2048xf32> to vector<4x2048xf32>
    %cst = arith.constant dense<0.000000e+00> : vector<8x2048xf32>
    %4 = tpu.matmul %1, %3, %cst {dimension_numbers = #tpu.dot_dimension_numbers<[1], [0], [0], [1], [0, 0, 1, 1], [], []>} : vector<8x4xf32>, vector<4x2048xf32>, vector<8x2048xf32> -> vector<8x2048xf32>
    %c0_6 = arith.constant 0 : index
    %c0_7 = arith.constant 0 : index
    %c0_8 = arith.constant 0 : index
    %c0_9 = arith.constant 0 : index
    %5 = vector.load %arg5[%c0_6, %c0_7, %c0_8, %c0_9] : memref<2x1x8x2688xf32, #tpu.memory_space<vmem>>, vector<1x1x8x2048xf32>
    %6 = vector.shape_cast %5 : vector<1x1x8x2048xf32> to vector<8x2048xf32>
    %7 = vector.shape_cast %4 : vector<8x2048xf32> to vector<1x1x8x2048xf32>
    tpu.vector_store %arg5[%c0_6, %c0_7, %c0_8, %c0_9], %7 {strides = array<i32>} : memref<2x1x8x2688xf32, #tpu.memory_space<vmem>>, vector<1x1x8x2048xf32>,
    %c0_10 = arith.constant 0 : index
    %c0_11 = arith.constant 0 : index
    %c0_12 = arith.constant 0 : index
    %c2048 = arith.constant 2048 : index
    %8 = vector.load %arg4[%c0_10, %c0_11, %c0_12, %c2048] : memref<2x1x4x2688xf32, #tpu.memory_space<vmem>>, vector<1x1x4x640xf32>
    %9 = vector.shape_cast %8 : vector<1x1x4x640xf32> to vector<4x640xf32>
    %cst_13 = arith.constant dense<0.000000e+00> : vector<8x640xf32>
    %10 = tpu.matmul %1, %9, %cst_13 {dimension_numbers = #tpu.dot_dimension_numbers<[1], [0], [0], [1], [0, 0, 1, 1], [], []>} : vector<8x4xf32>, vector<4x640xf32>, vector<8x640xf32> -> vector<8x640xf32>
    %c0_14 = arith.constant 0 : index
    %c0_15 = arith.constant 0 : index
    %c0_16 = arith.constant 0 : index
    %c2048_17 = arith.constant 2048 : index
    %11 = vector.load %arg5[%c0_14, %c0_15, %c0_16, %c2048_17] : memref<2x1x8x2688xf32, #tpu.memory_space<vmem>>, vector<1x1x8x640xf32>
    %12 = vector.shape_cast %11 : vector<1x1x8x640xf32> to vector<8x640xf32>
    %13 = vector.shape_cast %10 : vector<8x640xf32> to vector<1x1x8x640xf32>
    tpu.vector_store %arg5[%c0_14, %c0_15, %c0_16, %c2048_17], %13 {strides = array<i32>} : memref<2x1x8x2688xf32, #tpu.memory_space<vmem>>, vector<1x1x8x640xf32>,
    %c1 = arith.constant 1 : index
    %c0_18 = arith.constant 0 : index
    %c0_19 = arith.constant 0 : index
    %c0_20 = arith.constant 0 : index
    %14 = vector.load %arg4[%c1, %c0_18, %c0_19, %c0_20] : memref<2x1x4x2688xf32, #tpu.memory_space<vmem>>, vector<1x1x4x2048xf32>
    %15 = vector.shape_cast %14 : vector<1x1x4x2048xf32> to vector<4x2048xf32>
    %cst_21 = arith.constant dense<0.000000e+00> : vector<8x2048xf32>
    %16 = tpu.matmul %1, %15, %cst_21 {dimension_numbers = #tpu.dot_dimension_numbers<[1], [0], [0], [1], [0, 0, 1, 1], [], []>} : vector<8x4xf32>, vector<4x2048xf32>, vector<8x2048xf32> -> vector<8x2048xf32>
    %c1_22 = arith.constant 1 : index
    %c0_23 = arith.constant 0 : index
    %c0_24 = arith.constant 0 : index
    %c0_25 = arith.constant 0 : index
    %17 = vector.load %arg5[%c1_22, %c0_23, %c0_24, %c0_25] : memref<2x1x8x2688xf32, #tpu.memory_space<vmem>>, vector<1x1x8x2048xf32>
    %18 = vector.shape_cast %17 : vector<1x1x8x2048xf32> to vector<8x2048xf32>
    %19 = vector.shape_cast %16 : vector<8x2048xf32> to vector<1x1x8x2048xf32>
    tpu.vector_store %arg5[%c1_22, %c0_23, %c0_24, %c0_25], %19 {strides = array<i32>} : memref<2x1x8x2688xf32, #tpu.memory_space<vmem>>, vector<1x1x8x2048xf32>,
    %c1_26 = arith.constant 1 : index
    %c0_27 = arith.constant 0 : index
    %c0_28 = arith.constant 0 : index
    %c2048_29 = arith.constant 2048 : index
    %20 = vector.load %arg4[%c1_26, %c0_27, %c0_28, %c2048_29] : memref<2x1x4x2688xf32, #tpu.memory_space<vmem>>, vector<1x1x4x640xf32>
    %21 = vector.shape_cast %20 : vector<1x1x4x640xf32> to vector<4x640xf32>
    %cst_30 = arith.constant dense<0.000000e+00> : vector<8x640xf32>
    %22 = tpu.matmul %1, %21, %cst_30 {dimension_numbers = #tpu.dot_dimension_numbers<[1], [0], [0], [1], [0, 0, 1, 1], [], []>} : vector<8x4xf32>, vector<4x640xf32>, vector<8x640xf32> -> vector<8x640xf32>
    %c1_31 = arith.constant 1 : index
    %c0_32 = arith.constant 0 : index
    %c0_33 = arith.constant 0 : index
    %c2048_34 = arith.constant 2048 : index
    %23 = vector.load %arg5[%c1_31, %c0_32, %c0_33, %c2048_34] : memref<2x1x8x2688xf32, #tpu.memory_space<vmem>>, vector<1x1x8x640xf32>
    %24 = vector.shape_cast %23 : vector<1x1x8x640xf32> to vector<8x640xf32>
    %25 = vector.shape_cast %22 : vector<8x640xf32> to vector<1x1x8x640xf32>
    tpu.vector_store %arg5[%c1_31, %c0_32, %c0_33, %c2048_34], %25 {strides = array<i32>} : memref<2x1x8x2688xf32, #tpu.memory_space<vmem>>, vector<1x1x8x640xf32>,
    return
  }
  func.func @transform_0(%arg0: i32, %arg1: i32, %arg2: i32) -> (i32, i32, i32) {
    %c0_i32 = arith.constant 0 : i32
    %c0_i32_0 = arith.constant 0 : i32
    %c0_i32_1 = arith.constant 0 : i32
    return %arg0, %c0_i32, %c0_i32_0 : i32, i32, i32
  }
  func.func @transform_1(%arg0: i32, %arg1: i32, %arg2: i32) -> (i32, i32, i32, i32) {
    %c0_i32 = arith.constant 0 : i32
    %c0_i32_0 = arith.constant 0 : i32
    return %arg1, %arg0, %c0_i32, %arg2 : i32, i32, i32, i32
  }
  func.func @transform_2(%arg0: i32, %arg1: i32, %arg2: i32) -> (i32, i32, i32, i32) {
    %c0_i32 = arith.constant 0 : i32
    %c0_i32_0 = arith.constant 0 : i32
    return %arg1, %arg0, %c0_i32, %arg2 : i32, i32, i32, i32
  }
}

</mosaic_0001>

<llo_original>
// kernel: custom-call.1
$region0: #{custom-call.1}
  %s0 = inlined_call_operand.vmem [shape: c64[2,4,2], index: 0, kind: input, shape index: {}]
  %s1 = inlined_call_operand.vmem [shape: f32[2,4,2], index: 1, kind: output, shape index: {}]
  %s2 = scalar_lea.vmem %s0, 8
  %v3 = vld [vmem:[%s2] sm:$0xff]
  %4 = vst [vmem:[%s1] sm:$0xff] %v3

// kernel: custom-call
$region0: #{custom-call}
  %s0 = inlined_call_operand.vmem [shape: c64[2,4,2], index: 0, kind: input, shape index: {}]
  %s1 = inlined_call_operand.vmem [shape: f32[2,4,2], index: 1, kind: output, shape index: {}]
  %v2 = vld [vmem:[%s0] sm:$0xff]
  %3 = vst [vmem:[%s1] sm:$0xff] %v2

// kernel: neg.1
$region0: #{neg.1}
  #allocation0 [shape = 's32[1]{0}', space=sflag, size = 0x4, scoped, tag = 'scoped memory for neg.1']
  %s0 = inlined_call_operand.vmem [shape: f32[2,4,2], index: 0, kind: input, shape index: {}]
  %s1 = inlined_call_operand.vmem [shape: f32[2,4,2], index: 1, kind: output, shape index: {}]
  %v2 = vld [vmem:[%s0] sm:$0xf]
  %3 = xla_tuple %v2
  %4 = xla_tuple %3
  %v5 = vxor.u32 %v2, 2147483648
  %6 = xla_tuple %v5
  %7 = vst [vmem:[%s1] sm:$0xf] %v5
  %s8 = scalar_lea.vmem %s0, 4
  %v9 = vld [vmem:[%s8] sm:$0xf]
  %10 = xla_tuple %v9
  %11 = xla_tuple %10
  %v12 = vxor.u32 %v9, 2147483648
  %13 = xla_tuple %v12
  %s14 = scalar_lea.vmem %s1, 4
  %15 = vst [vmem:[%s14] sm:$0xf] %v12

// kernel: custom-call.3
$region0: #{custom-call.3}
  %s0 = inlined_call_operand.hbm [shape: c64[2,2,2,14,192], index: 0, kind: input, shape index: {}]
  %s1 = inlined_call_operand.vmem [shape: f32[2,2,2,14,192], index: 1, kind: output, shape index: {}]
  %s2 = scalar_lea.hbm %s0, 3584
  $region1: #{custom-call.3} parent=0
    #allocation0 [shape = 's32[1]{0}', space=sflag, size = 0x4, scoped, tag = 'scoped memory for custom-call.3']
    %3 = vsyncpa [#allocation0], 0
    %s4 = sshll.u32 %s1, 4
    %s5 = int_to_ptr.vmem [resolvable:$true] %s4
    %7 = dma.hbm_to_vmem [thread:$0]  %s2, 3584, %s5, [#allocation0]
    %8 = dma.done [#allocation0], 3584
    %9 = vsyncpa [#allocation0], 1

// kernel: custom-call.2
$region0: #{custom-call.2}
  %s0 = inlined_call_operand.hbm [shape: c64[2,2,2,14,192], index: 0, kind: input, shape index: {}]
  %s1 = inlined_call_operand.vmem [shape: f32[2,2,2,14,192], index: 1, kind: output, shape index: {}]
  $region1: #{custom-call.2} parent=0
    #allocation0 [shape = 's32[1]{0}', space=sflag, size = 0x4, scoped, tag = 'scoped memory for custom-call.2']
    %2 = vsyncpa [#allocation0], 0
    %s3 = sshll.u32 %s1, 4
    %s4 = int_to_ptr.vmem [resolvable:$true] %s3
    %6 = dma.hbm_to_vmem [thread:$0]  %s0, 3584, %s4, [#allocation0]
    %7 = dma.done [#allocation0], 3584
    %8 = vsyncpa [#allocation0], 1

// kernel: custom-call.4
$region0: #{custom-call.4}
  %s0 = inlined_call_operand.vmem [shape: f32[2,2,4,14,192], index: 0, kind: input, shape index: {}]
  %s1 = inlined_call_operand.vmem [shape: f32[2,2,4,14,192], index: 1, kind: input, shape index: {}]
  %s2 = inlined_call_operand.vmem [shape: c64[2,2,4,14,192], index: 2, kind: output, shape index: {}]
  %s4 = scalar_lea.vmem %s2, 512
  %v5 = vld [vmem:[%s0] sm:$0xff]
  %6 = vst [vmem:[%s2] sm:$0xff] %v5
  %s7 = scalar_lea.vmem %s2, 8
  %s8 = scalar_lea.vmem %s0, 8
  %v9 = vld [vmem:[%s8] sm:$0xff]
  %10 = vst [vmem:[%s7] sm:$0xff] %v9
  %s11 = scalar_lea.vmem %s2, 16
  %s12 = scalar_lea.vmem %s0, 16
  %v13 = vld [vmem:[%s12] sm:$0xff]
  %14 = vst [vmem:[%s11] sm:$0xff] %v13
  %s15 = scalar_lea.vmem %s2, 24
  %s16 = scalar_lea.vmem %s0, 24
  %v17 = vld [vmem:[%s16] sm:$0xff]
  %18 = vst [vmem:[%s15] sm:$0xff] %v17
  %s19 = scalar_lea.vmem %s2, 32
  %s20 = scalar_lea.vmem %s0, 32
  %v21 = vld [vmem:[%s20] sm:$0xff]
  %22 = vst [vmem:[%s19] sm:$0xff] %v21
  %s23 = scalar_lea.vmem %s2, 40
  %s24 = scalar_lea.vmem %s0, 40
  %v25 = vld [vmem:[%s24] sm:$0xff]
  %26 = vst [vmem:[%s23] sm:$0xff] %v25
  %s27 = scalar_lea.vmem %s2, 48
  %s28 = scalar_lea.vmem %s0, 48
  %v29 = vld [vmem:[%s28] sm:$0xff]
  %30 = vst [vmem:[%s27] sm:$0xff] %v29
  %s31 = scalar_lea.vmem %s2, 56
  %s32 = scalar_lea.vmem %s0, 56
  %v33 = vld [vmem:[%s32] sm:$0xff]
  %34 = vst [vmem:[%s31] sm:$0xff] %v33
  %s35 = scalar_lea.vmem %s2, 64
  %s36 = scalar_lea.vmem %s0, 64
  %v37 = vld [vmem:[%s36] sm:$0xff]
  %38 = vst [vmem:[%s35] sm:$0xff] %v37
  %s39 = scalar_lea.vmem %s2, 72
  %s40 = scalar_lea.vmem %s0, 72
  %v41 = vld [vmem:[%s40] sm:$0xff]
  %42 = vst [vmem:[%s39] sm:$0xff] %v41
  %s43 = scalar_lea.vmem %s2, 80
  %s44 = scalar_lea.vmem %s0, 80
  %v45 = vld [vmem:[%s44] sm:$0xff]
  %46 = vst [vmem:[%s43] sm:$0xff] %v45
  %s47 = scalar_lea.vmem %s2, 88
  %s48 = scalar_lea.vmem %s0, 88
  %v49 = vld [vmem:[%s48] sm:$0xff]
  %50 = vst [vmem:[%s47] sm:$0xff] %v49
  %s51 = scalar_lea.vmem %s2, 96
  %s52 = scalar_lea.vmem %s0, 96
  %v53 = vld [vmem:[%s52] sm:$0xff]
  %54 = vst [vmem:[%s51] sm:$0xff] %v53
  %s55 = scalar_lea.vmem %s2, 104
  %s56 = scalar_lea.vmem %s0, 104
  %v57 = vld [vmem:[%s56] sm:$0xff]
  %58 = vst [vmem:[%s55] sm:$0xff] %v57
  %s59 = scalar_lea.vmem %s2, 112
  %s60 = scalar_lea.vmem %s0, 112
  %v61 = vld [vmem:[%s60] sm:$0xff]
  %62 = vst [vmem:[%s59] sm:$0xff] %v61
  %s63 = scalar_lea.vmem %s2, 120
  %s64 = scalar_lea.vmem %s0, 120
  %v65 = vld [vmem:[%s64] sm:$0xff]
  %66 = vst [vmem:[%s63] sm:$0xff] %v65
  %s67 = scalar_lea.vmem %s2, 128
  %s68 = scalar_lea.vmem %s0, 128
  %v69 = vld [vmem:[%s68] sm:$0xff]
  %70 = vst [vmem:[%s67] sm:$0xff] %v69
  %s71 = scalar_lea.vmem %s2, 136
  %s72 = scalar_lea.vmem %s0, 136
  %v73 = vld [vmem:[%s72] sm:$0xff]
  %74 = vst [vmem:[%s71] sm:$0xff] %v73
  %s75 = scalar_lea.vmem %s2, 144
  %s76 = scalar_lea.vmem %s0, 144
  %v77 = vld [vmem:[%s76] sm:$0xff]
  %78 = vst [vmem:[%s75] sm:$0xff] %v77
  %s79 = scalar_lea.vmem %s2, 152
  %s80 = scalar_lea.vmem %s0, 152
  %v81 = vld [vmem:[%s80] sm:$0xff]
  %82 = vst [vmem:[%s79] sm:$0xff] %v81
  %s83 = scalar_lea.vmem %s2, 160
  %s84 = scalar_lea.vmem %s0, 160
  %v85 = vld [vmem:[%s84] sm:$0xff]
  %86 = vst [vmem:[%s83] sm:$0xff] %v85
  %s87 = scalar_lea.vmem %s2, 168
  %s88 = scalar_lea.vmem %s0, 168
  %v89 = vld [vmem:[%s88] sm:$0xff]
  %90 = vst [vmem:[%s87] sm:$0xff] %v89
  %s91 = scalar_lea.vmem %s2, 176
  %s92 = scalar_lea.vmem %s0, 176
  %v93 = vld [vmem:[%s92] sm:$0xff]
  %94 = vst [vmem:[%s91] sm:$0xff] %v93
  %s95 = scalar_lea.vmem %s2, 184
  %s96 = scalar_lea.vmem %s0, 184
  %v97 = vld [vmem:[%s96] sm:$0xff]
  %98 = vst [vmem:[%s95] sm:$0xff] %v97
  %s99 = scalar_lea.vmem %s2, 192
  %s100 = scalar_lea.vmem %s0, 192
  %v101 = vld [vmem:[%s100] sm:$0xff]
  %102 = vst [vmem:[%s99] sm:$0xff] %v101
  %s103 = scalar_lea.vmem %s2, 200
  %s104 = scalar_lea.vmem %s0, 200
  %v105 = vld [vmem:[%s104] sm:$0xff]
  %106 = vst [vmem:[%s103] sm:$0xff] %v105
  %s107 = scalar_lea.vmem %s2, 208
  %s108 = scalar_lea.vmem %s0, 208
  %v109 = vld [vmem:[%s108] sm:$0xff]
  %110 = vst [vmem:[%s107] sm:$0xff] %v109
  %s111 = scalar_lea.vmem %s2, 216
  %s112 = scalar_lea.vmem %s0, 216
  %v113 = vld [vmem:[%s112] sm:$0xff]
  %114 = vst [vmem:[%s111] sm:$0xff] %v113
  %s115 = scalar_lea.vmem %s2, 224
  %s116 = scalar_lea.vmem %s0, 224
  %v117 = vld [vmem:[%s116] sm:$0xff]
  %118 = vst [vmem:[%s115] sm:$0xff] %v117
  %s119 = scalar_lea.vmem %s2, 232
  %s120 = scalar_lea.vmem %s0, 232
  %v121 = vld [vmem:[%s120] sm:$0xff]
  %122 = vst [vmem:[%s119] sm:$0xff] %v121
  %s123 = scalar_lea.vmem %s2, 240
  %s124 = scalar_lea.vmem %s0, 240
  %v125 = vld [vmem:[%s124] sm:$0xff]
  %126 = vst [vmem:[%s123] sm:$0xff] %v125
  %s127 = scalar_lea.vmem %s2, 248
  %s128 = scalar_lea.vmem %s0, 248
  %v129 = vld [vmem:[%s128] sm:$0xff]
  %130 = vst [vmem:[%s127] sm:$0xff] %v129
  %s131 = scalar_lea.vmem %s2, 256
  %s132 = scalar_lea.vmem %s0, 256
  %v133 = vld [vmem:[%s132] sm:$0xff]
  %134 = vst [vmem:[%s131] sm:$0xff] %v133
  %s135 = scalar_lea.vmem %s2, 264
  %s136 = scalar_lea.vmem %s0, 264
  %v137 = vld [vmem:[%s136] sm:$0xff]
  %138 = vst [vmem:[%s135] sm:$0xff] %v137
  %s139 = scalar_lea.vmem %s2, 272
  %s140 = scalar_lea.vmem %s0, 272
  %v141 = vld [vmem:[%s140] sm:$0xff]
  %142 = vst [vmem:[%s139] sm:$0xff] %v141
  %s143 = scalar_lea.vmem %s2, 280
  %s144 = scalar_lea.vmem %s0, 280
  %v145 = vld [vmem:[%s144] sm:$0xff]
  %146 = vst [vmem:[%s143] sm:$0xff] %v145
  %s147 = scalar_lea.vmem %s2, 288
  %s148 = scalar_lea.vmem %s0, 288
  %v149 = vld [vmem:[%s148] sm:$0xff]
  %150 = vst [vmem:[%s147] sm:$0xff] %v149
  %s151 = scalar_lea.vmem %s2, 296
  %s152 = scalar_lea.vmem %s0, 296
  %v153 = vld [vmem:[%s152] sm:$0xff]
  %154 = vst [vmem:[%s151] sm:$0xff] %v153
  %s155 = scalar_lea.vmem %s2, 304
  %s156 = scalar_lea.vmem %s0, 304
  %v157 = vld [vmem:[%s156] sm:$0xff]
  %158 = vst [vmem:[%s155] sm:$0xff] %v157
  %s159 = scalar_lea.vmem %s2, 312
  %s160 = scalar_lea.vmem %s0, 312
  %v161 = vld [vmem:[%s160] sm:$0xff]
  %162 = vst [vmem:[%s159] sm:$0xff] %v161
  %s163 = scalar_lea.vmem %s2, 320
  %s164 = scalar_lea.vmem %s0, 320
  %v165 = vld [vmem:[%s164] sm:$0xff]
  %166 = vst [vmem:[%s163] sm:$0xff] %v165
  %s167 = scalar_lea.vmem %s2, 328
  %s168 = scalar_lea.vmem %s0, 328
  %v169 = vld [vmem:[%s168] sm:$0xff]
  %170 = vst [vmem:[%s167] sm:$0xff] %v169
  %s171 = scalar_lea.vmem %s2, 336
  %s172 = scalar_lea.vmem %s0, 336
  %v173 = vld [vmem:[%s172] sm:$0xff]
  %174 = vst [vmem:[%s171] sm:$0xff] %v173
  %s175 = scalar_lea.vmem %s2, 344
  %s176 = scalar_lea.vmem %s0, 344
  %v177 = vld [vmem:[%s176] sm:$0xff]
  %178 = vst [vmem:[%s175] sm:$0xff] %v177
  %s179 = scalar_lea.vmem %s2, 352
  %s180 = scalar_lea.vmem %s0, 352
  %v181 = vld [vmem:[%s180] sm:$0xff]
  %182 = vst [vmem:[%s179] sm:$0xff] %v181
  %s183 = scalar_lea.vmem %s2, 360
  %s184 = scalar_lea.vmem %s0, 360
  %v185 = vld [vmem:[%s184] sm:$0xff]
  %186 = vst [vmem:[%s183] sm:$0xff] %v185
  %s187 = scalar_lea.vmem %s2, 368
  %s188 = scalar_lea.vmem %s0, 368
  %v189 = vld [vmem:[%s188] sm:$0xff]
  %190 = vst [vmem:[%s187] sm:$0xff] %v189
  %s191 = scalar_lea.vmem %s2, 376
  %s192 = scalar_lea.vmem %s0, 376
  %v193 = vld [vmem:[%s192] sm:$0xff]
  %194 = vst [vmem:[%s191] sm:$0xff] %v193
  %s195 = scalar_lea.vmem %s2, 384
  %s196 = scalar_lea.vmem %s0, 384
  %v197 = vld [vmem:[%s196] sm:$0xff]
  %198 = vst [vmem:[%s195] sm:$0xff] %v197
  %s199 = scalar_lea.vmem %s2, 392
  %s200 = scalar_lea.vmem %s0, 392
  %v201 = vld [vmem:[%s200] sm:$0xff]
  %202 = vst [vmem:[%s199] sm:$0xff] %v201
  %s203 = scalar_lea.vmem %s2, 400
  %s204 = scalar_lea.vmem %s0, 400
  %v205 = vld [vmem:[%s204] sm:$0xff]
  %206 = vst [vmem:[%s203] sm:$0xff] %v205
  %s207 = scalar_lea.vmem %s2, 408
  %s208 = scalar_lea.vmem %s0, 408
  %v209 = vld [vmem:[%s208] sm:$0xff]
  %210 = vst [vmem:[%s207] sm:$0xff] %v209
  %s211 = scalar_lea.vmem %s2, 416
  %s212 = scalar_lea.vmem %s0, 416
  %v213 = vld [vmem:[%s212] sm:$0xff]
  %214 = vst [vmem:[%s211] sm:$0xff] %v213
  %s215 = scalar_lea.vmem %s2, 424
  %s216 = scalar_lea.vmem %s0, 424
  %v217 = vld [vmem:[%s216] sm:$0xff]
  %218 = vst [vmem:[%s215] sm:$0xff] %v217
  %s219 = scalar_lea.vmem %s2, 432
  %s220 = scalar_lea.vmem %s0, 432
  %v221 = vld [vmem:[%s220] sm:$0xff]
  %222 = vst [vmem:[%s219] sm:$0xff] %v221
  %s223 = scalar_lea.vmem %s2, 440
  %s224 = scalar_lea.vmem %s0, 440
  %v225 = vld [vmem:[%s224] sm:$0xff]
  %226 = vst [vmem:[%s223] sm:$0xff] %v225
  %s227 = scalar_lea.vmem %s2, 448
  %s228 = scalar_lea.vmem %s0, 448
  %v229 = vld [vmem:[%s228] sm:$0xff]
  %230 = vst [vmem:[%s227] sm:$0xff] %v229
  %s231 = scalar_lea.vmem %s2, 456
  %s232 = scalar_lea.vmem %s0, 456
  %v233 = vld [vmem:[%s232] sm:$0xff]
  %234 = vst [vmem:[%s231] sm:$0xff] %v233
  %s235 = scalar_lea.vmem %s2, 464
  %s236 = scalar_lea.vmem %s0, 464
  %v237 = vld [vmem:[%s236] sm:$0xff]
  %238 = vst [vmem:[%s235] sm:$0xff] %v237
  %s239 = scalar_lea.vmem %s2, 472
  %s240 = scalar_lea.vmem %s0, 472
  %v241 = vld [vmem:[%s240] sm:$0xff]
  %242 = vst [vmem:[%s239] sm:$0xff] %v241
  %s243 = scalar_lea.vmem %s2, 480
  %s244 = scalar_lea.vmem %s0, 480
  %v245 = vld [vmem:[%s244] sm:$0xff]
  %246 = vst [vmem:[%s243] sm:$0xff] %v245
  %s247 = scalar_lea.vmem %s2, 488
  %s248 = scalar_lea.vmem %s0, 488
  %v249 = vld [vmem:[%s248] sm:$0xff]
  %250 = vst [vmem:[%s247] sm:$0xff] %v249
  %s251 = scalar_lea.vmem %s2, 496
  %s252 = scalar_lea.vmem %s0, 496
  %v253 = vld [vmem:[%s252] sm:$0xff]
  %254 = vst [vmem:[%s251] sm:$0xff] %v253
  %s255 = scalar_lea.vmem %s2, 504
  %s256 = scalar_lea.vmem %s0, 504
  %v257 = vld [vmem:[%s256] sm:$0xff]
  %258 = vst [vmem:[%s255] sm:$0xff] %v257
  %v259 = vld [vmem:[%s1] sm:$0xff]
  %260 = vst [vmem:[%s4] sm:$0xff] %v259
  %s261 = scalar_lea.vmem %s4, 8
  %s262 = scalar_lea.vmem %s1, 8
  %v263 = vld [vmem:[%s262] sm:$0xff]
  %264 = vst [vmem:[%s261] sm:$0xff] %v263
  %s265 = scalar_lea.vmem %s4, 16
  %s266 = scalar_lea.vmem %s1, 16
  %v267 = vld [vmem:[%s266] sm:$0xff]
  %268 = vst [vmem:[%s265] sm:$0xff] %v267
  %s269 = scalar_lea.vmem %s4, 24
  %s270 = scalar_lea.vmem %s1, 24
  %v271 = vld [vmem:[%s270] sm:$0xff]
  %272 = vst [vmem:[%s269] sm:$0xff] %v271
  %s273 = scalar_lea.vmem %s4, 32
  %s274 = scalar_lea.vmem %s1, 32
  %v275 = vld [vmem:[%s274] sm:$0xff]
  %276 = vst [vmem:[%s273] sm:$0xff] %v275
  %s277 = scalar_lea.vmem %s4, 40
  %s278 = scalar_lea.vmem %s1, 40
  %v279 = vld [vmem:[%s278] sm:$0xff]
  %280 = vst [vmem:[%s277] sm:$0xff] %v279
  %s281 = scalar_lea.vmem %s4, 48
  %s282 = scalar_lea.vmem %s1, 48
  %v283 = vld [vmem:[%s282] sm:$0xff]
  %284 = vst [vmem:[%s281] sm:$0xff] %v283
  %s285 = scalar_lea.vmem %s4, 56
  %s286 = scalar_lea.vmem %s1, 56
  %v287 = vld [vmem:[%s286] sm:$0xff]
  %288 = vst [vmem:[%s285] sm:$0xff] %v287
  %s289 = scalar_lea.vmem %s4, 64
  %s290 = scalar_lea.vmem %s1, 64
  %v291 = vld [vmem:[%s290] sm:$0xff]
  %292 = vst [vmem:[%s289] sm:$0xff] %v291
  %s293 = scalar_lea.vmem %s4, 72
  %s294 = scalar_lea.vmem %s1, 72
  %v295 = vld [vmem:[%s294] sm:$0xff]
  %296 = vst [vmem:[%s293] sm:$0xff] %v295
  %s297 = scalar_lea.vmem %s4, 80
  %s298 = scalar_lea.vmem %s1, 80
  %v299 = vld [vmem:[%s298] sm:$0xff]
  %300 = vst [vmem:[%s297] sm:$0xff] %v299
  %s301 = scalar_lea.vmem %s4, 88
  %s302 = scalar_lea.vmem %s1, 88
  %v303 = vld [vmem:[%s302] sm:$0xff]
  %304 = vst [vmem:[%s301] sm:$0xff] %v303
  %s305 = scalar_lea.vmem %s4, 96
  %s306 = scalar_lea.vmem %s1, 96
  %v307 = vld [vmem:[%s306] sm:$0xff]
  %308 = vst [vmem:[%s305] sm:$0xff] %v307
  %s309 = scalar_lea.vmem %s4, 104
  %s310 = scalar_lea.vmem %s1, 104
  %v311 = vld [vmem:[%s310] sm:$0xff]
  %312 = vst [vmem:[%s309] sm:$0xff] %v311
  %s313 = scalar_lea.vmem %s4, 112
  %s314 = scalar_lea.vmem %s1, 112
  %v315 = vld [vmem:[%s314] sm:$0xff]
  %316 = vst [vmem:[%s313] sm:$0xff] %v315
  %s317 = scalar_lea.vmem %s4, 120
  %s318 = scalar_lea.vmem %s1, 120
  %v319 = vld [vmem:[%s318] sm:$0xff]
  %320 = vst [vmem:[%s317] sm:$0xff] %v319
  %s321 = scalar_lea.vmem %s4, 128
  %s322 = scalar_lea.vmem %s1, 128
  %v323 = vld [vmem:[%s322] sm:$0xff]
  %324 = vst [vmem:[%s321] sm:$0xff] %v323
  %s325 = scalar_lea.vmem %s4, 136
  %s326 = scalar_lea.vmem %s1, 136
  %v327 = vld [vmem:[%s326] sm:$0xff]
  %328 = vst [vmem:[%s325] sm:$0xff] %v327
  %s329 = scalar_lea.vmem %s4, 144
  %s330 = scalar_lea.vmem %s1, 144
  %v331 = vld [vmem:[%s330] sm:$0xff]
  %332 = vst [vmem:[%s329] sm:$0xff] %v331
  %s333 = scalar_lea.vmem %s4, 152
  %s334 = scalar_lea.vmem %s1, 152
  %v335 = vld [vmem:[%s334] sm:$0xff]
  %336 = vst [vmem:[%s333] sm:$0xff] %v335
  %s337 = scalar_lea.vmem %s4, 160
  %s338 = scalar_lea.vmem %s1, 160
  %v339 = vld [vmem:[%s338] sm:$0xff]
  %340 = vst [vmem:[%s337] sm:$0xff] %v339
  %s341 = scalar_lea.vmem %s4, 168
  %s342 = scalar_lea.vmem %s1, 168
  %v343 = vld [vmem:[%s342] sm:$0xff]
  %344 = vst [vmem:[%s341] sm:$0xff] %v343
  %s345 = scalar_lea.vmem %s4, 176
  %s346 = scalar_lea.vmem %s1, 176
  %v347 = vld [vmem:[%s346] sm:$0xff]
  %348 = vst [vmem:[%s345] sm:$0xff] %v347
  %s349 = scalar_lea.vmem %s4, 184
  %s350 = scalar_lea.vmem %s1, 184
  %v351 = vld [vmem:[%s350] sm:$0xff]
  %352 = vst [vmem:[%s349] sm:$0xff] %v351
  %s353 = scalar_lea.vmem %s4, 192
  %s354 = scalar_lea.vmem %s1, 192
  %v355 = vld [vmem:[%s354] sm:$0xff]
  %356 = vst [vmem:[%s353] sm:$0xff] %v355
  %s357 = scalar_lea.vmem %s4, 200
  %s358 = scalar_lea.vmem %s1, 200
  %v359 = vld [vmem:[%s358] sm:$0xff]
  %360 = vst [vmem:[%s357] sm:$0xff] %v359
  %s361 = scalar_lea.vmem %s4, 208
  %s362 = scalar_lea.vmem %s1, 208
  %v363 = vld [vmem:[%s362] sm:$0xff]
  %364 = vst [vmem:[%s361] sm:$0xff] %v363
  %s365 = scalar_lea.vmem %s4, 216
  %s366 = scalar_lea.vmem %s1, 216
  %v367 = vld [vmem:[%s366] sm:$0xff]
  %368 = vst [vmem:[%s365] sm:$0xff] %v367
  %s369 = scalar_lea.vmem %s4, 224
  %s370 = scalar_lea.vmem %s1, 224
  %v371 = vld [vmem:[%s370] sm:$0xff]
  %372 = vst [vmem:[%s369] sm:$0xff] %v371
  %s373 = scalar_lea.vmem %s4, 232
  %s374 = scalar_lea.vmem %s1, 232
  %v375 = vld [vmem:[%s374] sm:$0xff]
  %376 = vst [vmem:[%s373] sm:$0xff] %v375
  %s377 = scalar_lea.vmem %s4, 240
  %s378 = scalar_lea.vmem %s1, 240
  %v379 = vld [vmem:[%s378] sm:$0xff]
  %380 = vst [vmem:[%s377] sm:$0xff] %v379
  %s381 = scalar_lea.vmem %s4, 248
  %s382 = scalar_lea.vmem %s1, 248
  %v383 = vld [vmem:[%s382] sm:$0xff]
  %384 = vst [vmem:[%s381] sm:$0xff] %v383
  %s385 = scalar_lea.vmem %s4, 256
  %s386 = scalar_lea.vmem %s1, 256
  %v387 = vld [vmem:[%s386] sm:$0xff]
  %388 = vst [vmem:[%s385] sm:$0xff] %v387
  %s389 = scalar_lea.vmem %s4, 264
  %s390 = scalar_lea.vmem %s1, 264
  %v391 = vld [vmem:[%s390] sm:$0xff]
  %392 = vst [vmem:[%s389] sm:$0xff] %v391
  %s393 = scalar_lea.vmem %s4, 272
  %s394 = scalar_lea.vmem %s1, 272
  %v395 = vld [vmem:[%s394] sm:$0xff]
  %396 = vst [vmem:[%s393] sm:$0xff] %v395
  %s397 = scalar_lea.vmem %s4, 280
  %s398 = scalar_lea.vmem %s1, 280
  %v399 = vld [vmem:[%s398] sm:$0xff]
  %400 = vst [vmem:[%s397] sm:$0xff] %v399
  %s401 = scalar_lea.vmem %s4, 288
  %s402 = scalar_lea.vmem %s1, 288
  %v403 = vld [vmem:[%s402] sm:$0xff]
  %404 = vst [vmem:[%s401] sm:$0xff] %v403
  %s405 = scalar_lea.vmem %s4, 296
  %s406 = scalar_lea.vmem %s1, 296
  %v407 = vld [vmem:[%s406] sm:$0xff]
  %408 = vst [vmem:[%s405] sm:$0xff] %v407
  %s409 = scalar_lea.vmem %s4, 304
  %s410 = scalar_lea.vmem %s1, 304
  %v411 = vld [vmem:[%s410] sm:$0xff]
  %412 = vst [vmem:[%s409] sm:$0xff] %v411
  %s413 = scalar_lea.vmem %s4, 312
  %s414 = scalar_lea.vmem %s1, 312
  %v415 = vld [vmem:[%s414] sm:$0xff]
  %416 = vst [vmem:[%s413] sm:$0xff] %v415
  %s417 = scalar_lea.vmem %s4, 320
  %s418 = scalar_lea.vmem %s1, 320
  %v419 = vld [vmem:[%s418] sm:$0xff]
  %420 = vst [vmem:[%s417] sm:$0xff] %v419
  %s421 = scalar_lea.vmem %s4, 328
  %s422 = scalar_lea.vmem %s1, 328
  %v423 = vld [vmem:[%s422] sm:$0xff]
  %424 = vst [vmem:[%s421] sm:$0xff] %v423
  %s425 = scalar_lea.vmem %s4, 336
  %s426 = scalar_lea.vmem %s1, 336
  %v427 = vld [vmem:[%s426] sm:$0xff]
  %428 = vst [vmem:[%s425] sm:$0xff] %v427
  %s429 = scalar_lea.vmem %s4, 344
  %s430 = scalar_lea.vmem %s1, 344
  %v431 = vld [vmem:[%s430] sm:$0xff]
  %432 = vst [vmem:[%s429] sm:$0xff] %v431
  %s433 = scalar_lea.vmem %s4, 352
  %s434 = scalar_lea.vmem %s1, 352
  %v435 = vld [vmem:[%s434] sm:$0xff]
  %436 = vst [vmem:[%s433] sm:$0xff] %v435
  %s437 = scalar_lea.vmem %s4, 360
  %s438 = scalar_lea.vmem %s1, 360
  %v439 = vld [vmem:[%s438] sm:$0xff]
  %440 = vst [vmem:[%s437] sm:$0xff] %v439
  %s441 = scalar_lea.vmem %s4, 368
  %s442 = scalar_lea.vmem %s1, 368
  %v443 = vld [vmem:[%s442] sm:$0xff]
  %444 = vst [vmem:[%s441] sm:$0xff] %v443
  %s445 = scalar_lea.vmem %s4, 376
  %s446 = scalar_lea.vmem %s1, 376
  %v447 = vld [vmem:[%s446] sm:$0xff]
  %448 = vst [vmem:[%s445] sm:$0xff] %v447
  %s449 = scalar_lea.vmem %s4, 384
  %s450 = scalar_lea.vmem %s1, 384
  %v451 = vld [vmem:[%s450] sm:$0xff]
  %452 = vst [vmem:[%s449] sm:$0xff] %v451
  %s453 = scalar_lea.vmem %s4, 392
  %s454 = scalar_lea.vmem %s1, 392
  %v455 = vld [vmem:[%s454] sm:$0xff]
  %456 = vst [vmem:[%s453] sm:$0xff] %v455
  %s457 = scalar_lea.vmem %s4, 400
  %s458 = scalar_lea.vmem %s1, 400
  %v459 = vld [vmem:[%s458] sm:$0xff]
  %460 = vst [vmem:[%s457] sm:$0xff] %v459
  %s461 = scalar_lea.vmem %s4, 408
  %s462 = scalar_lea.vmem %s1, 408
  %v463 = vld [vmem:[%s462] sm:$0xff]
  %464 = vst [vmem:[%s461] sm:$0xff] %v463
  %s465 = scalar_lea.vmem %s4, 416
  %s466 = scalar_lea.vmem %s1, 416
  %v467 = vld [vmem:[%s466] sm:$0xff]
  %468 = vst [vmem:[%s465] sm:$0xff] %v467
  %s469 = scalar_lea.vmem %s4, 424
  %s470 = scalar_lea.vmem %s1, 424
  %v471 = vld [vmem:[%s470] sm:$0xff]
  %472 = vst [vmem:[%s469] sm:$0xff] %v471
  %s473 = scalar_lea.vmem %s4, 432
  %s474 = scalar_lea.vmem %s1, 432
  %v475 = vld [vmem:[%s474] sm:$0xff]
  %476 = vst [vmem:[%s473] sm:$0xff] %v475
  %s477 = scalar_lea.vmem %s4, 440
  %s478 = scalar_lea.vmem %s1, 440
  %v479 = vld [vmem:[%s478] sm:$0xff]
  %480 = vst [vmem:[%s477] sm:$0xff] %v479
  %s481 = scalar_lea.vmem %s4, 448
  %s482 = scalar_lea.vmem %s1, 448
  %v483 = vld [vmem:[%s482] sm:$0xff]
  %484 = vst [vmem:[%s481] sm:$0xff] %v483
  %s485 = scalar_lea.vmem %s4, 456
  %s486 = scalar_lea.vmem %s1, 456
  %v487 = vld [vmem:[%s486] sm:$0xff]
  %488 = vst [vmem:[%s485] sm:$0xff] %v487
  %s489 = scalar_lea.vmem %s4, 464
  %s490 = scalar_lea.vmem %s1, 464
  %v491 = vld [vmem:[%s490] sm:$0xff]
  %492 = vst [vmem:[%s489] sm:$0xff] %v491
  %s493 = scalar_lea.vmem %s4, 472
  %s494 = scalar_lea.vmem %s1, 472
  %v495 = vld [vmem:[%s494] sm:$0xff]
  %496 = vst [vmem:[%s493] sm:$0xff] %v495
  %s497 = scalar_lea.vmem %s4, 480
  %s498 = scalar_lea.vmem %s1, 480
  %v499 = vld [vmem:[%s498] sm:$0xff]
  %500 = vst [vmem:[%s497] sm:$0xff] %v499
  %s501 = scalar_lea.vmem %s4, 488
  %s502 = scalar_lea.vmem %s1, 488
  %v503 = vld [vmem:[%s502] sm:$0xff]
  %504 = vst [vmem:[%s501] sm:$0xff] %v503
  %s505 = scalar_lea.vmem %s4, 496
  %s506 = scalar_lea.vmem %s1, 496
  %v507 = vld [vmem:[%s506] sm:$0xff]
  %508 = vst [vmem:[%s505] sm:$0xff] %v507
  %s509 = scalar_lea.vmem %s4, 504
  %s510 = scalar_lea.vmem %s1, 504
  %v511 = vld [vmem:[%s510] sm:$0xff]
  %512 = vst [vmem:[%s509] sm:$0xff] %v511

// kernel: pusch_precode.1
$region0: #{pusch_precode.1}
  #allocation0 [shape = 'u32[]', space=smem, size = 0x4, offset = 0x4, fixed_abs, tag = 'smem constant byte address 0x4 - core index']
  #allocation1 [shape = 'u32[144,128]{1,0:T(1,128)}', space=vmem, size = 0x12000, scoped, tag = 'internal scratch']
  %s0 = inlined_call_operand.vmem [shape: f32[2,8,4], index: 0, kind: input, shape index: {}]
  %s1 = inlined_call_operand.vmem [shape: f32[2,2,4,2688], index: 1, kind: input, shape index: {}]
  %s2 = inlined_call_operand.vmem [shape: f32[2,2,8,2688], index: 2, kind: output, shape index: {}]
  %s3 = sld [smem:[#allocation0]]
  $region86: #{pusch_precode.1} parent=0
    _
  %s5 = ssub.s32 1, %s3
  %s6 = scalar_select 0, %s5, %s3
  $region1: #{pusch_precode.1} parent=0
    #allocation2 [shape = 'u8[172032]{0}', space=vmem, size = 0x2a000, scoped, tag = 'input window, operand 1']
    #allocation3 [shape = 'u8[344064]{0}', space=vmem, size = 0x54000, scoped, tag = 'output window, operand 0']
    loop: start=0, step=1, limit=4
    $region2: #{pusch_precode.1} parent=1 // loop_pre_header
      _
    $region3: #{pusch_precode.1} parent=1 // loop_header
      %s8 = sphi 0, %s12
      %p9 = scmp.ge.s32.totalorder %s8, 4
      %s15 = sphi 0, %s34
      %s16 = sphi 0, %s30
      %s17 = sphi 0, %s26
      %s18 = sphi 0, %s15
      %s19 = sphi 0, %s16
      %s20 = sphi 0, %s17
      %s21 = sphi 0, %s18
      %s22 = sphi 0, %s19
      %s23 = sphi 0, %s20
      %s37 = sphi 0, %s39
      %s40 = sphi 0, %s37
      %s41 = sphi 0, %s40
      %s57 = sphi 0, %s41
      %s67 = sphi 0, %s69
      %s70 = sphi 0, %s67
      %s71 = sphi 0, %s70
      %s87 = sphi 0, %s71
      %s97 = sphi 0, %s99
      %s100 = sphi 0, %s97
      %s101 = sphi 0, %s100
      %s117 = sphi 0, %s101
    $region4: #{pusch_precode.1} parent=1 // loop_header_branch
      %11 = sbr.rel (%p9) target = $region8
    $region5: #{pusch_precode.1} parent=1 // loop_body
      %s13 = ssub.s32 %s8, 1
      %s14 = ssub.s32 %s8, 2
      %s24 = sadd.s32 1, %s17
      %p25 = scmp.ge.s32.totalorder %s24, 1
      %s26 = scalar_select %p25, 0, %s24
      %s27 = sadd.s32 1, %s16
      %s28 = scalar_select %p25, %s27, %s16
      %p29 = scmp.ge.s32.totalorder %s28, 1
      %s30 = scalar_select %p29, 0, %s28
      %s31 = sadd.s32 1, %s15
      %s32 = scalar_select %p29, %s31, %s15
      %p33 = scmp.ge.s32.totalorder %s32, 2
      %s34 = scalar_select %p33, 0, %s32
      %s35 = ssub.s32 %s15, %s34
      %p36 = scmp.eq.s32.totalorder %s35, 0
      %s38 = sadd.s32 %s37, 1
      %s39 = scalar_select %p36, %s37, %s38
      %p42 = pneg %p36
      %p43 = scmp.eq.s32.totalorder %s8, 1
      %p44 = por %p42, %p43
      %p45 = scmp.ne.s32.totalorder %s37, %s40
      %p46 = scmp.eq.s32.totalorder %s8, 0
      %p47 = por %p45, %p46
      %p48 = scmp.ne.s32.totalorder %s37, %s40
      %p49 = scmp.eq.s32.totalorder %s13, 1
      %p50 = por %p48, %p49
      %p51 = scmp.ne.s32.totalorder %s40, %s41
      %p52 = scmp.eq.s32.totalorder %s13, 0
      %p53 = por %p51, %p52
      %p54 = scmp.ne.s32.totalorder %s40, %s41
      %p55 = scmp.eq.s32.totalorder %s14, 1
      %p56 = por %p54, %p55
      %p58 = scmp.ne.s32.totalorder %s41, %s57
      %p59 = scmp.eq.s32.totalorder %s14, 0
      %p60 = por %p58, %p59
      %s61 = ssub.s32 %s16, %s30
      %s62 = ssub.s32 %s15, %s34
      %s63 = sor.u32 %s61, %s62
      %s64 = ssub.s32 %s17, %s26
      %s65 = sor.u32 %s63, %s64
      %p66 = scmp.eq.s32.totalorder %s65, 0
      %s68 = sadd.s32 %s67, 1
      %s69 = scalar_select %p66, %s67, %s68
      %p72 = pneg %p66
      %p73 = scmp.eq.s32.totalorder %s8, 1
      %p74 = por %p72, %p73
      %p75 = scmp.ne.s32.totalorder %s67, %s70
      %p76 = scmp.eq.s32.totalorder %s8, 0
      %p77 = por %p75, %p76
      %p78 = scmp.ne.s32.totalorder %s67, %s70
      %p79 = scmp.eq.s32.totalorder %s13, 1
      %p80 = por %p78, %p79
      %p81 = scmp.ne.s32.totalorder %s70, %s71
      %p82 = scmp.eq.s32.totalorder %s13, 0
      %p83 = por %p81, %p82
      %p84 = scmp.ne.s32.totalorder %s70, %s71
      %p85 = scmp.eq.s32.totalorder %s14, 1
      %p86 = por %p84, %p85
      %p88 = scmp.ne.s32.totalorder %s71, %s87
      %p89 = scmp.eq.s32.totalorder %s14, 0
      %p90 = por %p88, %p89
      %s91 = ssub.s32 %s16, %s30
      %s92 = ssub.s32 %s15, %s34
      %s93 = sor.u32 %s91, %s92
      %s94 = ssub.s32 %s17, %s26
      %s95 = sor.u32 %s93, %s94
      %p96 = scmp.eq.s32.totalorder %s95, 0
      %s98 = sadd.s32 %s97, 1
      %s99 = scalar_select %p96, %s97, %s98
      %p102 = pneg %p96
      %p103 = scmp.eq.s32.totalorder %s8, 1
      %p104 = por %p102, %p103
      %p105 = scmp.ne.s32.totalorder %s97, %s100
      %p106 = scmp.eq.s32.totalorder %s8, 0
      %p107 = por %p105, %p106
      %p108 = scmp.ne.s32.totalorder %s97, %s100
      %p109 = scmp.eq.s32.totalorder %s13, 1
      %p110 = por %p108, %p109
      %p111 = scmp.ne.s32.totalorder %s100, %s101
      %p112 = scmp.eq.s32.totalorder %s13, 0
      %p113 = por %p111, %p112
      %p114 = scmp.ne.s32.totalorder %s100, %s101
      %p115 = scmp.eq.s32.totalorder %s14, 1
      %p116 = por %p114, %p115
      %p118 = scmp.ne.s32.totalorder %s101, %s117
      %p119 = scmp.eq.s32.totalorder %s14, 0
      %p120 = por %p118, %p119
      %p121 = scmp.le.s32.totalorder 1, %s8
      %p122 = scmp.lt.s32.totalorder %s8, 3
      %p123 = pnand %p121, %p122
      %p124 = pneg %p123
      // Predicated region
      $region9: #{pusch_precode.1} parent=5 // pred_check
        _
      $region10: #{pusch_precode.1} parent=5 // pred_check_branch
        %126 = sbr.rel (%p123) target = $region12
      $region11: #{pusch_precode.1} parent=5 // pred_region
        %s127 = ssub.s32 %s8, 1
      $region12: #{pusch_precode.1} parent=5 // pred_fallthru
        _
      %p128 = scmp.lt.s32.totalorder %s8, 2
      // Predicated region
      $region13: #{pusch_precode.1} parent=5 // pred_check
        %p129 = pneg %p128
      $region14: #{pusch_precode.1} parent=5 // pred_check_branch
        %131 = sbr.rel (%p129) target = $region16
      $region15: #{pusch_precode.1} parent=5 // pred_region
        // Predicated region
        $region17: #{pusch_precode.1} parent=15 // pred_check
          %p132 = pneg %p47
        $region18: #{pusch_precode.1} parent=15 // pred_check_branch
          %134 = sbr.rel (%p132) target = $region20
        $region19: #{pusch_precode.1} parent=15 // pred_region
          %p135 = scmp.lt.s32.totalorder %s15, 1
          %s136 = scalar_select %p135, %s15, 1
          %s137 = smul.addr %s136, 8
          %s138 = scalar_lea.vmem %s0, %s137
        $region20: #{pusch_precode.1} parent=15 // pred_fallthru
          _
        // Predicated region
        $region21: #{pusch_precode.1} parent=15 // pred_check
          %p139 = pneg %p77
        $region22: #{pusch_precode.1} parent=15 // pred_check_branch
          %141 = sbr.rel (%p139) target = $region24
        $region23: #{pusch_precode.1} parent=15 // pred_region
          %s142 = sand.u32 %s67, 1
          %s143 = sand.u32 %s67, 1
          %s144 = smul.addr %s143, 168
          %s145 = scalar_lea.vmem [#allocation2], %s144
          %s146 = smul.u32 2, %s16
          %s147 = smul.u32 21, %s17
          %s148 = smul.addr %s15, 21
          %s149 = sadd.s32 %s147, %s148
          %s150 = smul.addr %s146, 42
          %s151 = sadd.s32 %s149, %s150
          %s152 = smul.addr %s151, 4
          %s153 = scalar_lea.vmem %s1, %s152
          // Predicated region
          $region25: #{pusch_precode.1} parent=23 // pred_check
            _
          $region26: #{pusch_precode.1} parent=23 // pred_check_branch
            %155 = sbr.rel (0) target = $region28
          $region27: #{pusch_precode.1} parent=23 // pred_region
            // Predicated region
            $region29: #{pusch_precode.1} parent=27 // pred_check
              _
            $region30: #{pusch_precode.1} parent=27 // pred_check_branch
              %157 = sbr.rel (0) target = $region32
            $region31: #{pusch_precode.1} parent=27 // pred_region
              %s158 = scalar_lea.vmem %s153, 80
              %s159 = scalar_lea.vmem %s145, 80 [#allocation2]
              loop: start=0, step=1, limit=1
              $region33: #{pusch_precode.1} parent=31 // loop_pre_header
                _
              $region34: #{pusch_precode.1} parent=31 // loop_header
                %s161 = sphi 0, %s165
                %p162 = scmp.ge.s32.totalorder %s161, 1
                %s166 = sphi %s153, %s153
                %s167 = sphi %s145, %s145
              $region35: #{pusch_precode.1} parent=31 // loop_header_branch
                %164 = sbr.rel (%p162) target = $region39
              $region36: #{pusch_precode.1} parent=31 // loop_body
                %v168 = vld [vmem:[%s166] sm:$0xff]
                %169 = vst [vmem:[%s167] sm:$0xff] %v168
                %v170 = vld [vmem:[%s166 + $0x8] sm:$0xff]
                %171 = vst [vmem:[%s167 + $0x8] sm:$0xff] %v170
                %v172 = vld [vmem:[%s166 + $0x10] sm:$0xff]
                %173 = vst [vmem:[%s167 + $0x10] sm:$0xff] %v172
                %v174 = vld [vmem:[%s166 + $0x18] sm:$0xff]
                %175 = vst [vmem:[%s167 + $0x18] sm:$0xff] %v174
                %v176 = vld [vmem:[%s166 + $0x20] sm:$0xff]
                %177 = vst [vmem:[%s167 + $0x20] sm:$0xff] %v176
                %v178 = vld [vmem:[%s166 + $0x28] sm:$0xff]
                %179 = vst [vmem:[%s167 + $0x28] sm:$0xff] %v178
                %v180 = vld [vmem:[%s166 + $0x30] sm:$0xff]
                %181 = vst [vmem:[%s167 + $0x30] sm:$0xff] %v180
                %v182 = vld [vmem:[%s166 + $0x38] sm:$0xff]
                %183 = vst [vmem:[%s167 + $0x38] sm:$0xff] %v182
                %v184 = vld [vmem:[%s166 + $0x40] sm:$0xff]
                %185 = vst [vmem:[%s167 + $0x40] sm:$0xff] %v184
                %v186 = vld [vmem:[%s166 + $0x48] sm:$0xff]
                %187 = vst [vmem:[%s167 + $0x48] sm:$0xff] %v186
                %v188 = vld [vmem:[%s166 + $0xa8] sm:$0xff]
                %189 = vst [vmem:[%s167 + $0x54] sm:$0xff] %v188
                %v190 = vld [vmem:[%s166 + $0xb0] sm:$0xff]
                %191 = vst [vmem:[%s167 + $0x5c] sm:$0xff] %v190
                %v192 = vld [vmem:[%s166 + $0xb8] sm:$0xff]
                %193 = vst [vmem:[%s167 + $0x64] sm:$0xff] %v192
                %v194 = vld [vmem:[%s166 + $0xc0] sm:$0xff]
                %195 = vst [vmem:[%s167 + $0x6c] sm:$0xff] %v194
                %v196 = vld [vmem:[%s166 + $0xc8] sm:$0xff]
                %197 = vst [vmem:[%s167 + $0x74] sm:$0xff] %v196
                %v198 = vld [vmem:[%s166 + $0xd0] sm:$0xff]
                %199 = vst [vmem:[%s167 + $0x7c] sm:$0xff] %v198
                %v200 = vld [vmem:[%s166 + $0xd8] sm:$0xff]
                %201 = vst [vmem:[%s167 + $0x84] sm:$0xff] %v200
                %v202 = vld [vmem:[%s166 + $0xe0] sm:$0xff]
                %203 = vst [vmem:[%s167 + $0x8c] sm:$0xff] %v202
                %v204 = vld [vmem:[%s166 + $0xe8] sm:$0xff]
                %205 = vst [vmem:[%s167 + $0x94] sm:$0xff] %v204
                %v206 = vld [vmem:[%s166 + $0xf0] sm:$0xff]
                %207 = vst [vmem:[%s167 + $0x9c] sm:$0xff] %v206
              $region37: #{pusch_precode.1} parent=31 // loop_footer
                %s165 = sadd.s32 1, %s161
              $region38: #{pusch_precode.1} parent=31 // loop_footer_branch
                %160 = sbr.rel target = $region34
              $region39: #{pusch_precode.1} parent=31 // loop_exit
                _
              loop: start=0, step=1, limit=1
              $region40: #{pusch_precode.1} parent=31 // loop_pre_header
                _
              $region41: #{pusch_precode.1} parent=31 // loop_header
                %s210 = sphi 0, %s214
                %p211 = scmp.ge.s32.totalorder %s210, 1
                %s215 = sphi %s158, %s158
                %s216 = sphi %s159, %s159
              $region42: #{pusch_precode.1} parent=31 // loop_header_branch
                %213 = sbr.rel (%p211) target = $region46
              $region43: #{pusch_precode.1} parent=31 // loop_body
                %v217 = vld [vmem:[%s215] sm:$0xf]
                %218 = vst [vmem:[%s216] sm:$0xf] %v217
                %v219 = vld [vmem:[%s215 + $0xa8] sm:$0xf]
                %220 = vst [vmem:[%s216 + $0x54] sm:$0xf] %v219
              $region44: #{pusch_precode.1} parent=31 // loop_footer
                %s214 = sadd.s32 1, %s210
              $region45: #{pusch_precode.1} parent=31 // loop_footer_branch
                %209 = sbr.rel target = $region41
              $region46: #{pusch_precode.1} parent=31 // loop_exit
                _
            $region32: #{pusch_precode.1} parent=27 // pred_fallthru
              _
          $region28: #{pusch_precode.1} parent=23 // pred_fallthru
            _
          %221 = vnop
        $region24: #{pusch_precode.1} parent=15 // pred_fallthru
          _
      $region16: #{pusch_precode.1} parent=5 // pred_fallthru
        _
      %p222 = scmp.le.s32.totalorder 1, %s8
      %p223 = scmp.lt.s32.totalorder %s8, 3
      %p224 = pnand %p222, %p223
      %p225 = pneg %p224
      // Predicated region
      $region47: #{pusch_precode.1} parent=5 // pred_check
        _
      $region48: #{pusch_precode.1} parent=5 // pred_check_branch
        %227 = sbr.rel (%p224) target = $region50
      $region49: #{pusch_precode.1} parent=5 // pred_region
        %s228 = ssub.s32 %s8, 1
        %s229 = sand.u32 %s70, 1
        %s230 = sand.u32 %s70, 1
        %s231 = smul.addr %s230, 168
        %s232 = scalar_lea.vmem [#allocation2], %s231
        // Predicated region
        $region51: #{pusch_precode.1} parent=49 // pred_check
          %p233 = pneg %p83
        $region52: #{pusch_precode.1} parent=49 // pred_check_branch
          %235 = sbr.rel (%p233) target = $region54
        $region53: #{pusch_precode.1} parent=49 // pred_region
          _
        $region54: #{pusch_precode.1} parent=49 // pred_fallthru
          _
        %p236 = scmp.lt.s32.totalorder %s18, 1
        %s237 = scalar_select %p236, %s18, 1
        %s238 = smul.addr %s237, 8
        %s239 = scalar_lea.vmem %s0, %s238
        %p240 = pneg %p53
        %p241 = pneg %p50
        %s242 = sand.u32 %s70, 1
        %s243 = sand.u32 %s70, 1
        %s244 = smul.addr %s243, 168
        %s245 = scalar_lea.vmem [#allocation2], %s244
        %p246 = pneg %p83
        %p247 = pneg %p80
        %p248 = pneg %p113
        %p249 = pneg %p110
        %s250 = sand.u32 %s100, 1
        %s251 = sand.u32 %s100, 1
        %s252 = smul.addr %s251, 336
        %s253 = scalar_lea.vmem [#allocation3], %s252
        %p254 = scmp.lt.s32.totalorder %s18, 1
        %s255 = scalar_select %p254, %s18, 1
        %s256 = smul.addr %s255, 8
        %s257 = scalar_lea.vmem %s0, %s256
        %s258 = smul.u32 2, %s19
        %s259 = smul.u32 21, %s20
        %s260 = smul.u32 2, %s19
        %s261 = smul.u32 21, %s20
        %v262 = vld [vmem:[%s257] sm:$0xff]
        %v263 = vld [vmem:[%s232] sm:$0xff]
        %v264 = vld [vmem:[%s232 + $0x8] sm:$0xff]
        %v265 = vld [vmem:[%s232 + $0x10] sm:$0xff]
        %v266 = vld [vmem:[%s232 + $0x18] sm:$0xff]
        %v267 = vld [vmem:[%s232 + $0x20] sm:$0xff]
        %v268 = vld [vmem:[%s232 + $0x28] sm:$0xff]
        %v269 = vld [vmem:[%s232 + $0x30] sm:$0xff]
        %v270 = vld [vmem:[%s232 + $0x38] sm:$0xff]
        %v279 = vcombine.high %v263, %v263
        %v280 = vcombine.high %v264, %v264
        %v281 = vcombine.high %v265, %v265
        %v282 = vcombine.high %v266, %v266
        %v283 = vcombine.high %v267, %v267
        %v284 = vcombine.high %v268, %v268
        %v285 = vcombine.high %v269, %v269
        %v286 = vcombine.high %v270, %v270
        %vm287 = vcmask 31744
        %v289 = vsel %vm287, %v262, 0
        %vm291 = vcmask 1043456
        %v292 = vsel %vm291, %v263, 0
        %v294 = vsel %vm291, %v279, 0
        %v296 = vsel %vm291, %v264, 0
        %v298 = vsel %vm291, %v280, 0
        %v300 = vsel %vm291, %v265, 0
        %v302 = vsel %vm291, %v281, 0
        %v304 = vsel %vm291, %v266, 0
        %v306 = vsel %vm291, %v282, 0
        %v308 = vsel %vm291, %v267, 0
        %v310 = vsel %vm291, %v283, 0
        %v312 = vsel %vm291, %v268, 0
        %v314 = vsel %vm291, %v284, 0
        %v316 = vsel %vm291, %v269, 0
        %v318 = vsel %vm291, %v285, 0
        %v320 = vsel %vm291, %v270, 0
        %v322 = vsel %vm291, %v286, 0
        %324 = vmatprep.subr.mxu0 %v294
        %325 = vmatpush1.msra.mxu0 %v292
        %326 = vmatprep.subr.mxu0 0.0
        %327 = vmatpush1.msra.mxu0 0.0
        %328 = vmatprep.subr.mxu0 0.0
        %329 = vmatpush1.msra.mxu0 0.0
        %330 = vmatprep.subr.mxu0 0.0
        %331 = vmatpush1.msra.mxu0 0.0
        %332 = vmatprep.subr.mxu0 0.0
        %333 = vmatpush1.msra.mxu0 0.0
        %334 = vmatprep.subr.mxu0 0.0
        %335 = vmatpush1.msra.mxu0 0.0
        %336 = vmatprep.subr.mxu0 0.0
        %337 = vmatpush1.msra.mxu0 0.0
        %338 = vmatprep.subr.mxu0 0.0
        %339 = vmatpush1.msra.mxu0 0.0
        %340 = vmatprep.subr.mxu0 0.0
        %341 = vmatpush1.msra.mxu0 0.0
        %342 = vmatprep.subr.mxu0 0.0
        %343 = vmatpush1.msra.mxu0 0.0
        %344 = vmatprep.subr.mxu0 0.0
        %345 = vmatpush1.msra.mxu0 0.0
        %346 = vmatprep.subr.mxu0 0.0
        %347 = vmatpush1.msra.mxu0 0.0
        %348 = vmatprep.subr.mxu0 0.0
        %349 = vmatpush1.msra.mxu0 0.0
        %350 = vmatprep.subr.mxu0 0.0
        %351 = vmatpush1.msra.mxu0 0.0
        %352 = vmatprep.subr.mxu0 0.0
        %353 = vmatpush1.msra.mxu0 0.0
        %354 = vmatprep.subr.mxu0 0.0
        %355 = vmatpush1.msra.mxu0 0.0
        %356 = vmatprep.subr.mxu0 0.0
        %357 = vmatpush1.msra.mxu0 0.0
        %358 = vmatprep.subr.mxu0 0.0
        %359 = vmatpush1.msra.mxu0 0.0
        %360 = vmatprep.subr.mxu0 0.0
        %361 = vmatpush1.msra.mxu0 0.0
        %362 = vmatprep.subr.mxu0 0.0
        %363 = vmatpush1.msra.mxu0 0.0
        %364 = vmatprep.subr.mxu0 0.0
        %365 = vmatpush1.msra.mxu0 0.0
        %366 = vmatprep.subr.mxu0 0.0
        %367 = vmatpush1.msra.mxu0 0.0
        %368 = vmatprep.subr.mxu0 0.0
        %369 = vmatpush1.msra.mxu0 0.0
        %370 = vmatprep.subr.mxu0 0.0
        %371 = vmatpush1.msra.mxu0 0.0
        %372 = vmatprep.subr.mxu0 0.0
        %373 = vmatpush1.msra.mxu0 0.0
        %374 = vmatprep.subr.mxu0 0.0
        %375 = vmatpush1.msra.mxu0 0.0
        %376 = vmatprep.subr.mxu0 0.0
        %377 = vmatpush1.msra.mxu0 0.0
        %378 = vmatprep.subr.mxu0 0.0
        %379 = vmatpush1.msra.mxu0 0.0
        %380 = vmatprep.subr.mxu0 0.0
        %381 = vmatpush1.msra.mxu0 0.0
        %382 = vmatprep.subr.mxu0 0.0
        %383 = vmatpush1.msra.mxu0 0.0
        %384 = vmatprep.subr.mxu0 0.0
        %385 = vmatpush1.msra.mxu0 0.0
        %386 = vmatprep.subr.mxu0 0.0
        %387 = vmatpush1.msra.mxu0 0.0
        %388 = vmatprep.mubr.f32.mxu0 0.0
        %389 = vmatmul.mubr.f32.gmra.mrb[0].mxu0 %v289
        %v390 = vpop.f32.mrb[0].mxu0
        %v391 = vadd.f32 0.0, %v390
        %v392 = vpop.f32.mrb[0].mxu0
        %v393 = vadd.f32 0.0, %v392
        %394 = vdwg.mxu0
        %395 = vmatprep.subr.mxu0 %v298
        %396 = vmatpush1.msra.mxu0 %v296
        %397 = vmatprep.subr.mxu0 0.0
        %398 = vmatpush1.msra.mxu0 0.0
        %399 = vmatprep.subr.mxu0 0.0
        %400 = vmatpush1.msra.mxu0 0.0
        %401 = vmatprep.subr.mxu0 0.0
        %402 = vmatpush1.msra.mxu0 0.0
        %403 = vmatprep.subr.mxu0 0.0
        %404 = vmatpush1.msra.mxu0 0.0
        %405 = vmatprep.subr.mxu0 0.0
        %406 = vmatpush1.msra.mxu0 0.0
        %407 = vmatprep.subr.mxu0 0.0
        %408 = vmatpush1.msra.mxu0 0.0
        %409 = vmatprep.subr.mxu0 0.0
        %410 = vmatpush1.msra.mxu0 0.0
        %411 = vmatprep.subr.mxu0 0.0
        %412 = vmatpush1.msra.mxu0 0.0
        %413 = vmatprep.subr.mxu0 0.0
        %414 = vmatpush1.msra.mxu0 0.0
        %415 = vmatprep.subr.mxu0 0.0
        %416 = vmatpush1.msra.mxu0 0.0
        %417 = vmatprep.subr.mxu0 0.0
        %418 = vmatpush1.msra.mxu0 0.0
        %419 = vmatprep.subr.mxu0 0.0
        %420 = vmatpush1.msra.mxu0 0.0
        %421 = vmatprep.subr.mxu0 0.0
        %422 = vmatpush1.msra.mxu0 0.0
        %423 = vmatprep.subr.mxu0 0.0
        %424 = vmatpush1.msra.mxu0 0.0
        %425 = vmatprep.subr.mxu0 0.0
        %426 = vmatpush1.msra.mxu0 0.0
        %427 = vmatprep.subr.mxu0 0.0
        %428 = vmatpush1.msra.mxu0 0.0
        %429 = vmatprep.subr.mxu0 0.0
        %430 = vmatpush1.msra.mxu0 0.0
        %431 = vmatprep.subr.mxu0 0.0
        %432 = vmatpush1.msra.mxu0 0.0
        %433 = vmatprep.subr.mxu0 0.0
        %434 = vmatpush1.msra.mxu0 0.0
        %435 = vmatprep.subr.mxu0 0.0
        %436 = vmatpush1.msra.mxu0 0.0
        %437 = vmatprep.subr.mxu0 0.0
        %438 = vmatpush1.msra.mxu0 0.0
        %439 = vmatprep.subr.mxu0 0.0
        %440 = vmatpush1.msra.mxu0 0.0
        %441 = vmatprep.subr.mxu0 0.0
        %442 = vmatpush1.msra.mxu0 0.0
        %443 = vmatprep.subr.mxu0 0.0
        %444 = vmatpush1.msra.mxu0 0.0
        %445 = vmatprep.subr.mxu0 0.0
        %446 = vmatpush1.msra.mxu0 0.0
        %447 = vmatprep.subr.mxu0 0.0
        %448 = vmatpush1.msra.mxu0 0.0
        %449 = vmatprep.subr.mxu0 0.0
        %450 = vmatpush1.msra.mxu0 0.0
        %451 = vmatprep.subr.mxu0 0.0
        %452 = vmatpush1.msra.mxu0 0.0
        %453 = vmatprep.subr.mxu0 0.0
        %454 = vmatpush1.msra.mxu0 0.0
        %455 = vmatprep.subr.mxu0 0.0
        %456 = vmatpush1.msra.mxu0 0.0
        %457 = vmatprep.subr.mxu0 0.0
        %458 = vmatpush1.msra.mxu0 0.0
        %459 = vmatprep.mubr.f32.mxu0 0.0
        %460 = vmatmul.mubr.f32.gmra.mrb[0].mxu0 %v289
        %v461 = vpop.f32.mrb[0].mxu0
        %v462 = vadd.f32 0.0, %v461
        %v463 = vpop.f32.mrb[0].mxu0
        %v464 = vadd.f32 0.0, %v463
        %465 = vdwg.mxu0
        %466 = vmatprep.subr.mxu0 %v302
        %467 = vmatpush1.msra.mxu0 %v300
        %468 = vmatprep.subr.mxu0 0.0
        %469 = vmatpush1.msra.mxu0 0.0
        %470 = vmatprep.subr.mxu0 0.0
        %471 = vmatpush1.msra.mxu0 0.0
        %472 = vmatprep.subr.mxu0 0.0
        %473 = vmatpush1.msra.mxu0 0.0
        %474 = vmatprep.subr.mxu0 0.0
        %475 = vmatpush1.msra.mxu0 0.0
        %476 = vmatprep.subr.mxu0 0.0
        %477 = vmatpush1.msra.mxu0 0.0
        %478 = vmatprep.subr.mxu0 0.0
        %479 = vmatpush1.msra.mxu0 0.0
        %480 = vmatprep.subr.mxu0 0.0
        %481 = vmatpush1.msra.mxu0 0.0
        %482 = vmatprep.subr.mxu0 0.0
        %483 = vmatpush1.msra.mxu0 0.0
        %484 = vmatprep.subr.mxu0 0.0
        %485 = vmatpush1.msra.mxu0 0.0
        %486 = vmatprep.subr.mxu0 0.0
        %487 = vmatpush1.msra.mxu0 0.0
        %488 = vmatprep.subr.mxu0 0.0
        %489 = vmatpush1.msra.mxu0 0.0
        %490 = vmatprep.subr.mxu0 0.0
        %491 = vmatpush1.msra.mxu0 0.0
        %492 = vmatprep.subr.mxu0 0.0
        %493 = vmatpush1.msra.mxu0 0.0
        %494 = vmatprep.subr.mxu0 0.0
        %495 = vmatpush1.msra.mxu0 0.0
        %496 = vmatprep.subr.mxu0 0.0
        %497 = vmatpush1.msra.mxu0 0.0
        %498 = vmatprep.subr.mxu0 0.0
        %499 = vmatpush1.msra.mxu0 0.0
        %500 = vmatprep.subr.mxu0 0.0
        %501 = vmatpush1.msra.mxu0 0.0
        %502 = vmatprep.subr.mxu0 0.0
        %503 = vmatpush1.msra.mxu0 0.0
        %504 = vmatprep.subr.mxu0 0.0
        %505 = vmatpush1.msra.mxu0 0.0
        %506 = vmatprep.subr.mxu0 0.0
        %507 = vmatpush1.msra.mxu0 0.0
        %508 = vmatprep.subr.mxu0 0.0
        %509 = vmatpush1.msra.mxu0 0.0
        %510 = vmatprep.subr.mxu0 0.0
        %511 = vmatpush1.msra.mxu0 0.0
        %512 = vmatprep.subr.mxu0 0.0
        %513 = vmatpush1.msra.mxu0 0.0
        %514 = vmatprep.subr.mxu0 0.0
        %515 = vmatpush1.msra.mxu0 0.0
        %516 = vmatprep.subr.mxu0 0.0
        %517 = vmatpush1.msra.mxu0 0.0
        %518 = vmatprep.subr.mxu0 0.0
        %519 = vmatpush1.msra.mxu0 0.0
        %520 = vmatprep.subr.mxu0 0.0
        %521 = vmatpush1.msra.mxu0 0.0
        %522 = vmatprep.subr.mxu0 0.0
        %523 = vmatpush1.msra.mxu0 0.0
        %524 = vmatprep.subr.mxu0 0.0
        %525 = vmatpush1.msra.mxu0 0.0
        %526 = vmatprep.subr.mxu0 0.0
        %527 = vmatpush1.msra.mxu0 0.0
        %528 = vmatprep.subr.mxu0 0.0
        %529 = vmatpush1.msra.mxu0 0.0
        %530 = vmatprep.mubr.f32.mxu0 0.0
        %531 = vmatmul.mubr.f32.gmra.mrb[0].mxu0 %v289
        %v532 = vpop.f32.mrb[0].mxu0
        %v533 = vadd.f32 0.0, %v532
        %v534 = vpop.f32.mrb[0].mxu0
        %v535 = vadd.f32 0.0, %v534
        %536 = vdwg.mxu0
        %537 = vmatprep.subr.mxu0 %v306
        %538 = vmatpush1.msra.mxu0 %v304
        %539 = vmatprep.subr.mxu0 0.0
        %540 = vmatpush1.msra.mxu0 0.0
        %541 = vmatprep.subr.mxu0 0.0
        %542 = vmatpush1.msra.mxu0 0.0
        %543 = vmatprep.subr.mxu0 0.0
        %544 = vmatpush1.msra.mxu0 0.0
        %545 = vmatprep.subr.mxu0 0.0
        %546 = vmatpush1.msra.mxu0 0.0
        %547 = vmatprep.subr.mxu0 0.0
        %548 = vmatpush1.msra.mxu0 0.0
        %549 = vmatprep.subr.mxu0 0.0
        %550 = vmatpush1.msra.mxu0 0.0
        %551 = vmatprep.subr.mxu0 0.0
        %552 = vmatpush1.msra.mxu0 0.0
        %553 = vmatprep.subr.mxu0 0.0
        %554 = vmatpush1.msra.mxu0 0.0
        %555 = vmatprep.subr.mxu0 0.0
        %556 = vmatpush1.msra.mxu0 0.0
        %557 = vmatprep.subr.mxu0 0.0
        %558 = vmatpush1.msra.mxu0 0.0
        %559 = vmatprep.subr.mxu0 0.0
        %560 = vmatpush1.msra.mxu0 0.0
        %561 = vmatprep.subr.mxu0 0.0
        %562 = vmatpush1.msra.mxu0 0.0
        %563 = vmatprep.subr.mxu0 0.0
        %564 = vmatpush1.msra.mxu0 0.0
        %565 = vmatprep.subr.mxu0 0.0
        %566 = vmatpush1.msra.mxu0 0.0
        %567 = vmatprep.subr.mxu0 0.0
        %568 = vmatpush1.msra.mxu0 0.0
        %569 = vmatprep.subr.mxu0 0.0
        %570 = vmatpush1.msra.mxu0 0.0
        %571 = vmatprep.subr.mxu0 0.0
        %572 = vmatpush1.msra.mxu0 0.0
        %573 = vmatprep.subr.mxu0 0.0
        %574 = vmatpush1.msra.mxu0 0.0
        %575 = vmatprep.subr.mxu0 0.0
        %576 = vmatpush1.msra.mxu0 0.0
        %577 = vmatprep.subr.mxu0 0.0
        %578 = vmatpush1.msra.mxu0 0.0
        %579 = vmatprep.subr.mxu0 0.0
        %580 = vmatpush1.msra.mxu0 0.0
        %581 = vmatprep.subr.mxu0 0.0
        %582 = vmatpush1.msra.mxu0 0.0
        %583 = vmatprep.subr.mxu0 0.0
        %584 = vmatpush1.msra.mxu0 0.0
        %585 = vmatprep.subr.mxu0 0.0
        %586 = vmatpush1.msra.mxu0 0.0
        %587 = vmatprep.subr.mxu0 0.0
        %588 = vmatpush1.msra.mxu0 0.0
        %589 = vmatprep.subr.mxu0 0.0
        %590 = vmatpush1.msra.mxu0 0.0
        %591 = vmatprep.subr.mxu0 0.0
        %592 = vmatpush1.msra.mxu0 0.0
        %593 = vmatprep.subr.mxu0 0.0
        %594 = vmatpush1.msra.mxu0 0.0
        %595 = vmatprep.subr.mxu0 0.0
        %596 = vmatpush1.msra.mxu0 0.0
        %597 = vmatprep.subr.mxu0 0.0
        %598 = vmatpush1.msra.mxu0 0.0
        %599 = vmatprep.subr.mxu0 0.0
        %600 = vmatpush1.msra.mxu0 0.0
        %601 = vmatprep.mubr.f32.mxu0 0.0
        %602 = vmatmul.mubr.f32.gmra.mrb[0].mxu0 %v289
        %v603 = vpop.f32.mrb[0].mxu0
        %v604 = vadd.f32 0.0, %v603
        %v605 = vpop.f32.mrb[0].mxu0
        %v606 = vadd.f32 0.0, %v605
        %607 = vdwg.mxu0
        %608 = vmatprep.subr.mxu0 %v310
        %609 = vmatpush1.msra.mxu0 %v308
        %610 = vmatprep.subr.mxu0 0.0
        %611 = vmatpush1.msra.mxu0 0.0
        %612 = vmatprep.subr.mxu0 0.0
        %613 = vmatpush1.msra.mxu0 0.0
        %614 = vmatprep.subr.mxu0 0.0
        %615 = vmatpush1.msra.mxu0 0.0
        %616 = vmatprep.subr.mxu0 0.0
        %617 = vmatpush1.msra.mxu0 0.0
        %618 = vmatprep.subr.mxu0 0.0
        %619 = vmatpush1.msra.mxu0 0.0
        %620 = vmatprep.subr.mxu0 0.0
        %621 = vmatpush1.msra.mxu0 0.0
        %622 = vmatprep.subr.mxu0 0.0
        %623 = vmatpush1.msra.mxu0 0.0
        %624 = vmatprep.subr.mxu0 0.0
        %625 = vmatpush1.msra.mxu0 0.0
        %626 = vmatprep.subr.mxu0 0.0
        %627 = vmatpush1.msra.mxu0 0.0
        %628 = vmatprep.subr.mxu0 0.0
        %629 = vmatpush1.msra.mxu0 0.0
        %630 = vmatprep.subr.mxu0 0.0
        %631 = vmatpush1.msra.mxu0 0.0
        %632 = vmatprep.subr.mxu0 0.0
        %633 = vmatpush1.msra.mxu0 0.0
        %634 = vmatprep.subr.mxu0 0.0
        %635 = vmatpush1.msra.mxu0 0.0
        %636 = vmatprep.subr.mxu0 0.0
        %637 = vmatpush1.msra.mxu0 0.0
        %638 = vmatprep.subr.mxu0 0.0
        %639 = vmatpush1.msra.mxu0 0.0
        %640 = vmatprep.subr.mxu0 0.0
        %641 = vmatpush1.msra.mxu0 0.0
        %642 = vmatprep.subr.mxu0 0.0
        %643 = vmatpush1.msra.mxu0 0.0
        %644 = vmatprep.subr.mxu0 0.0
        %645 = vmatpush1.msra.mxu0 0.0
        %646 = vmatprep.subr.mxu0 0.0
        %647 = vmatpush1.msra.mxu0 0.0
        %648 = vmatprep.subr.mxu0 0.0
        %649 = vmatpush1.msra.mxu0 0.0
        %650 = vmatprep.subr.mxu0 0.0
        %651 = vmatpush1.msra.mxu0 0.0
        %652 = vmatprep.subr.mxu0 0.0
        %653 = vmatpush1.msra.mxu0 0.0
        %654 = vmatprep.subr.mxu0 0.0
        %655 = vmatpush1.msra.mxu0 0.0
        %656 = vmatprep.subr.mxu0 0.0
        %657 = vmatpush1.msra.mxu0 0.0
        %658 = vmatprep.subr.mxu0 0.0
        %659 = vmatpush1.msra.mxu0 0.0
        %660 = vmatprep.subr.mxu0 0.0
        %661 = vmatpush1.msra.mxu0 0.0
        %662 = vmatprep.subr.mxu0 0.0
        %663 = vmatpush1.msra.mxu0 0.0
        %664 = vmatprep.subr.mxu0 0.0
        %665 = vmatpush1.msra.mxu0 0.0
        %666 = vmatprep.subr.mxu0 0.0
        %667 = vmatpush1.msra.mxu0 0.0
        %668 = vmatprep.subr.mxu0 0.0
        %669 = vmatpush1.msra.mxu0 0.0
        %670 = vmatprep.subr.mxu0 0.0
        %671 = vmatpush1.msra.mxu0 0.0
        %672 = vmatprep.mubr.f32.mxu0 0.0
        %673 = vmatmul.mubr.f32.gmra.mrb[0].mxu0 %v289
        %v674 = vpop.f32.mrb[0].mxu0
        %v675 = vadd.f32 0.0, %v674
        %v676 = vpop.f32.mrb[0].mxu0
        %v677 = vadd.f32 0.0, %v676
        %678 = vdwg.mxu0
        %679 = vmatprep.subr.mxu0 %v314
        %680 = vmatpush1.msra.mxu0 %v312
        %681 = vmatprep.subr.mxu0 0.0
        %682 = vmatpush1.msra.mxu0 0.0
        %683 = vmatprep.subr.mxu0 0.0
        %684 = vmatpush1.msra.mxu0 0.0
        %685 = vmatprep.subr.mxu0 0.0
        %686 = vmatpush1.msra.mxu0 0.0
        %687 = vmatprep.subr.mxu0 0.0
        %688 = vmatpush1.msra.mxu0 0.0
        %689 = vmatprep.subr.mxu0 0.0
        %690 = vmatpush1.msra.mxu0 0.0
        %691 = vmatprep.subr.mxu0 0.0
        %692 = vmatpush1.msra.mxu0 0.0
        %693 = vmatprep.subr.mxu0 0.0
        %694 = vmatpush1.msra.mxu0 0.0
        %695 = vmatprep.subr.mxu0 0.0
        %696 = vmatpush1.msra.mxu0 0.0
        %697 = vmatprep.subr.mxu0 0.0
        %698 = vmatpush1.msra.mxu0 0.0
        %699 = vmatprep.subr.mxu0 0.0
        %700 = vmatpush1.msra.mxu0 0.0
        %701 = vmatprep.subr.mxu0 0.0
        %702 = vmatpush1.msra.mxu0 0.0
        %703 = vmatprep.subr.mxu0 0.0
        %704 = vmatpush1.msra.mxu0 0.0
        %705 = vmatprep.subr.mxu0 0.0
        %706 = vmatpush1.msra.mxu0 0.0
        %707 = vmatprep.subr.mxu0 0.0
        %708 = vmatpush1.msra.mxu0 0.0
        %709 = vmatprep.subr.mxu0 0.0
        %710 = vmatpush1.msra.mxu0 0.0
        %711 = vmatprep.subr.mxu0 0.0
        %712 = vmatpush1.msra.mxu0 0.0
        %713 = vmatprep.subr.mxu0 0.0
        %714 = vmatpush1.msra.mxu0 0.0
        %715 = vmatprep.subr.mxu0 0.0
        %716 = vmatpush1.msra.mxu0 0.0
        %717 = vmatprep.subr.mxu0 0.0
        %718 = vmatpush1.msra.mxu0 0.0
        %719 = vmatprep.subr.mxu0 0.0
        %720 = vmatpush1.msra.mxu0 0.0
        %721 = vmatprep.subr.mxu0 0.0
        %722 = vmatpush1.msra.mxu0 0.0
        %723 = vmatprep.subr.mxu0 0.0
        %724 = vmatpush1.msra.mxu0 0.0
        %725 = vmatprep.subr.mxu0 0.0
        %726 = vmatpush1.msra.mxu0 0.0
        %727 = vmatprep.subr.mxu0 0.0
        %728 = vmatpush1.msra.mxu0 0.0
        %729 = vmatprep.subr.mxu0 0.0
        %730 = vmatpush1.msra.mxu0 0.0
        %731 = vmatprep.subr.mxu0 0.0
        %732 = vmatpush1.msra.mxu0 0.0
        %733 = vmatprep.subr.mxu0 0.0
        %734 = vmatpush1.msra.mxu0 0.0
        %735 = vmatprep.subr.mxu0 0.0
        %736 = vmatpush1.msra.mxu0 0.0
        %737 = vmatprep.subr.mxu0 0.0
        %738 = vmatpush1.msra.mxu0 0.0
        %739 = vmatprep.subr.mxu0 0.0
        %740 = vmatpush1.msra.mxu0 0.0
        %741 = vmatprep.subr.mxu0 0.0
        %742 = vmatpush1.msra.mxu0 0.0
        %743 = vmatprep.mubr.f32.mxu0 0.0
        %744 = vmatmul.mubr.f32.gmra.mrb[0].mxu0 %v289
        %v745 = vpop.f32.mrb[0].mxu0
        %v746 = vadd.f32 0.0, %v745
        %v747 = vpop.f32.mrb[0].mxu0
        %v748 = vadd.f32 0.0, %v747
        %749 = vdwg.mxu0
        %750 = vmatprep.subr.mxu0 %v318
        %751 = vmatpush1.msra.mxu0 %v316
        %752 = vmatprep.subr.mxu0 0.0
        %753 = vmatpush1.msra.mxu0 0.0
        %754 = vmatprep.subr.mxu0 0.0
        %755 = vmatpush1.msra.mxu0 0.0
        %756 = vmatprep.subr.mxu0 0.0
        %757 = vmatpush1.msra.mxu0 0.0
        %758 = vmatprep.subr.mxu0 0.0
        %759 = vmatpush1.msra.mxu0 0.0
        %760 = vmatprep.subr.mxu0 0.0
        %761 = vmatpush1.msra.mxu0 0.0
        %762 = vmatprep.subr.mxu0 0.0
        %763 = vmatpush1.msra.mxu0 0.0
        %764 = vmatprep.subr.mxu0 0.0
        %765 = vmatpush1.msra.mxu0 0.0
        %766 = vmatprep.subr.mxu0 0.0
        %767 = vmatpush1.msra.mxu0 0.0
        %768 = vmatprep.subr.mxu0 0.0
        %769 = vmatpush1.msra.mxu0 0.0
        %770 = vmatprep.subr.mxu0 0.0
        %771 = vmatpush1.msra.mxu0 0.0
        %772 = vmatprep.subr.mxu0 0.0
        %773 = vmatpush1.msra.mxu0 0.0
        %774 = vmatprep.subr.mxu0 0.0
        %775 = vmatpush1.msra.mxu0 0.0
        %776 = vmatprep.subr.mxu0 0.0
        %777 = vmatpush1.msra.mxu0 0.0
        %778 = vmatprep.subr.mxu0 0.0
        %779 = vmatpush1.msra.mxu0 0.0
        %780 = vmatprep.subr.mxu0 0.0
        %781 = vmatpush1.msra.mxu0 0.0
        %782 = vmatprep.subr.mxu0 0.0
        %783 = vmatpush1.msra.mxu0 0.0
        %784 = vmatprep.subr.mxu0 0.0
        %785 = vmatpush1.msra.mxu0 0.0
        %786 = vmatprep.subr.mxu0 0.0
        %787 = vmatpush1.msra.mxu0 0.0
        %788 = vmatprep.subr.mxu0 0.0
        %789 = vmatpush1.msra.mxu0 0.0
        %790 = vmatprep.subr.mxu0 0.0
        %791 = vmatpush1.msra.mxu0 0.0
        %792 = vmatprep.subr.mxu0 0.0
        %793 = vmatpush1.msra.mxu0 0.0
        %794 = vmatprep.subr.mxu0 0.0
        %795 = vmatpush1.msra.mxu0 0.0
        %796 = vmatprep.subr.mxu0 0.0
        %797 = vmatpush1.msra.mxu0 0.0
        %798 = vmatprep.subr.mxu0 0.0
        %799 = vmatpush1.msra.mxu0 0.0
        %800 = vmatprep.subr.mxu0 0.0
        %801 = vmatpush1.msra.mxu0 0.0
        %802 = vmatprep.subr.mxu0 0.0
        %803 = vmatpush1.msra.mxu0 0.0
        %804 = vmatprep.subr.mxu0 0.0
        %805 = vmatpush1.msra.mxu0 0.0
        %806 = vmatprep.subr.mxu0 0.0
        %807 = vmatpush1.msra.mxu0 0.0
        %808 = vmatprep.subr.mxu0 0.0
        %809 = vmatpush1.msra.mxu0 0.0
        %810 = vmatprep.subr.mxu0 0.0
        %811 = vmatpush1.msra.mxu0 0.0
        %812 = vmatprep.subr.mxu0 0.0
        %813 = vmatpush1.msra.mxu0 0.0
        %814 = vmatprep.mubr.f32.mxu0 0.0
        %815 = vmatmul.mubr.f32.gmra.mrb[0].mxu0 %v289
        %v816 = vpop.f32.mrb[0].mxu0
        %v817 = vadd.f32 0.0, %v816
        %v818 = vpop.f32.mrb[0].mxu0
        %v819 = vadd.f32 0.0, %v818
        %820 = vdwg.mxu0
        %821 = vmatprep.subr.mxu0 %v322
        %822 = vmatpush1.msra.mxu0 %v320
        %823 = vmatprep.subr.mxu0 0.0
        %824 = vmatpush1.msra.mxu0 0.0
        %825 = vmatprep.subr.mxu0 0.0
        %826 = vmatpush1.msra.mxu0 0.0
        %827 = vmatprep.subr.mxu0 0.0
        %828 = vmatpush1.msra.mxu0 0.0
        %829 = vmatprep.subr.mxu0 0.0
        %830 = vmatpush1.msra.mxu0 0.0
        %831 = vmatprep.subr.mxu0 0.0
        %832 = vmatpush1.msra.mxu0 0.0
        %833 = vmatprep.subr.mxu0 0.0
        %834 = vmatpush1.msra.mxu0 0.0
        %835 = vmatprep.subr.mxu0 0.0
        %836 = vmatpush1.msra.mxu0 0.0
        %837 = vmatprep.subr.mxu0 0.0
        %838 = vmatpush1.msra.mxu0 0.0
        %839 = vmatprep.subr.mxu0 0.0
        %840 = vmatpush1.msra.mxu0 0.0
        %841 = vmatprep.subr.mxu0 0.0
        %842 = vmatpush1.msra.mxu0 0.0
        %843 = vmatprep.subr.mxu0 0.0
        %844 = vmatpush1.msra.mxu0 0.0
        %845 = vmatprep.subr.mxu0 0.0
        %846 = vmatpush1.msra.mxu0 0.0
        %847 = vmatprep.subr.mxu0 0.0
        %848 = vmatpush1.msra.mxu0 0.0
        %849 = vmatprep.subr.mxu0 0.0
        %850 = vmatpush1.msra.mxu0 0.0
        %851 = vmatprep.subr.mxu0 0.0
        %852 = vmatpush1.msra.mxu0 0.0
        %853 = vmatprep.subr.mxu0 0.0
        %854 = vmatpush1.msra.mxu0 0.0
        %855 = vmatprep.subr.mxu0 0.0
        %856 = vmatpush1.msra.mxu0 0.0
        %857 = vmatprep.subr.mxu0 0.0
        %858 = vmatpush1.msra.mxu0 0.0
        %859 = vmatprep.subr.mxu0 0.0
        %860 = vmatpush1.msra.mxu0 0.0
        %861 = vmatprep.subr.mxu0 0.0
        %862 = vmatpush1.msra.mxu0 0.0
        %863 = vmatprep.subr.mxu0 0.0
        %864 = vmatpush1.msra.mxu0 0.0
        %865 = vmatprep.subr.mxu0 0.0
        %866 = vmatpush1.msra.mxu0 0.0
        %867 = vmatprep.subr.mxu0 0.0
        %868 = vmatpush1.msra.mxu0 0.0
        %869 = vmatprep.subr.mxu0 0.0
        %870 = vmatpush1.msra.mxu0 0.0
        %871 = vmatprep.subr.mxu0 0.0
        %872 = vmatpush1.msra.mxu0 0.0
        %873 = vmatprep.subr.mxu0 0.0
        %874 = vmatpush1.msra.mxu0 0.0
        %875 = vmatprep.subr.mxu0 0.0
        %876 = vmatpush1.msra.mxu0 0.0
        %877 = vmatprep.subr.mxu0 0.0
        %878 = vmatpush1.msra.mxu0 0.0
        %879 = vmatprep.subr.mxu0 0.0
        %880 = vmatpush1.msra.mxu0 0.0
        %881 = vmatprep.subr.mxu0 0.0
        %882 = vmatpush1.msra.mxu0 0.0
        %883 = vmatprep.subr.mxu0 0.0
        %884 = vmatpush1.msra.mxu0 0.0
        %885 = vmatprep.mubr.f32.mxu0 0.0
        %886 = vmatmul.mubr.f32.gmra.mrb[0].mxu0 %v289
        %v887 = vpop.f32.mrb[0].mxu0
        %v888 = vadd.f32 0.0, %v887
        %v889 = vpop.f32.mrb[0].mxu0
        %v890 = vadd.f32 0.0, %v889
        %891 = vdwg.mxu0
        %892 = vst [vmem:[%s253] sm:$0xff] %v391
        %893 = vst [vmem:[%s253 + $0x8] sm:$0xff] %v393
        %894 = vst [vmem:[%s253 + $0x10] sm:$0xff] %v462
        %895 = vst [vmem:[%s253 + $0x18] sm:$0xff] %v464
        %896 = vst [vmem:[%s253 + $0x20] sm:$0xff] %v533
        %897 = vst [vmem:[%s253 + $0x28] sm:$0xff] %v535
        %898 = vst [vmem:[%s253 + $0x30] sm:$0xff] %v604
        %899 = vst [vmem:[%s253 + $0x38] sm:$0xff] %v606
        %900 = vst [vmem:[%s253 + $0x40] sm:$0xff] %v675
        %901 = vst [vmem:[%s253 + $0x48] sm:$0xff] %v677
        %902 = vst [vmem:[%s253 + $0x50] sm:$0xff] %v746
        %903 = vst [vmem:[%s253 + $0x58] sm:$0xff] %v748
        %904 = vst [vmem:[%s253 + $0x60] sm:$0xff] %v817
        %905 = vst [vmem:[%s253 + $0x68] sm:$0xff] %v819
        %906 = vst [vmem:[%s253 + $0x70] sm:$0xff] %v888
        %907 = vst [vmem:[%s253 + $0x78] sm:$0xff] %v890
        %v908 = vld [vmem:[%s232 + $0x40] sm:$0xff]
        %v909 = vld [vmem:[%s232 + $0x48] sm:$0xff]
        %v910 = vld [vmem:[%s232 + $0x50] sm:$0xf]
        %v914 = vcombine.high %v908, %v908
        %v915 = vcombine.high %v909, %v909
        %v916 = vsel %vm291, %v908, 0
        %v918 = vsel %vm291, %v914, 0
        %v920 = vsel %vm291, %v909, 0
        %v922 = vsel %vm291, %v915, 0
        %v924 = vsel %vm291, %v910, 0
        %926 = vmatprep.subr.mxu0 %v918
        %927 = vmatpush1.msra.mxu0 %v916
        %928 = vmatprep.subr.mxu0 0.0
        %929 = vmatpush1.msra.mxu0 0.0
        %930 = vmatprep.subr.mxu0 0.0
        %931 = vmatpush1.msra.mxu0 0.0
        %932 = vmatprep.subr.mxu0 0.0
        %933 = vmatpush1.msra.mxu0 0.0
        %934 = vmatprep.subr.mxu0 0.0
        %935 = vmatpush1.msra.mxu0 0.0
        %936 = vmatprep.subr.mxu0 0.0
        %937 = vmatpush1.msra.mxu0 0.0
        %938 = vmatprep.subr.mxu0 0.0
        %939 = vmatpush1.msra.mxu0 0.0
        %940 = vmatprep.subr.mxu0 0.0
        %941 = vmatpush1.msra.mxu0 0.0
        %942 = vmatprep.subr.mxu0 0.0
        %943 = vmatpush1.msra.mxu0 0.0
        %944 = vmatprep.subr.mxu0 0.0
        %945 = vmatpush1.msra.mxu0 0.0
        %946 = vmatprep.subr.mxu0 0.0
        %947 = vmatpush1.msra.mxu0 0.0
        %948 = vmatprep.subr.mxu0 0.0
        %949 = vmatpush1.msra.mxu0 0.0
        %950 = vmatprep.subr.mxu0 0.0
        %951 = vmatpush1.msra.mxu0 0.0
        %952 = vmatprep.subr.mxu0 0.0
        %953 = vmatpush1.msra.mxu0 0.0
        %954 = vmatprep.subr.mxu0 0.0
        %955 = vmatpush1.msra.mxu0 0.0
        %956 = vmatprep.subr.mxu0 0.0
        %957 = vmatpush1.msra.mxu0 0.0
        %958 = vmatprep.subr.mxu0 0.0
        %959 = vmatpush1.msra.mxu0 0.0
        %960 = vmatprep.subr.mxu0 0.0
        %961 = vmatpush1.msra.mxu0 0.0
        %962 = vmatprep.subr.mxu0 0.0
        %963 = vmatpush1.msra.mxu0 0.0
        %964 = vmatprep.subr.mxu0 0.0
        %965 = vmatpush1.msra.mxu0 0.0
        %966 = vmatprep.subr.mxu0 0.0
        %967 = vmatpush1.msra.mxu0 0.0
        %968 = vmatprep.subr.mxu0 0.0
        %969 = vmatpush1.msra.mxu0 0.0
        %970 = vmatprep.subr.mxu0 0.0
        %971 = vmatpush1.msra.mxu0 0.0
        %972 = vmatprep.subr.mxu0 0.0
        %973 = vmatpush1.msra.mxu0 0.0
        %974 = vmatprep.subr.mxu0 0.0
        %975 = vmatpush1.msra.mxu0 0.0
        %976 = vmatprep.subr.mxu0 0.0
        %977 = vmatpush1.msra.mxu0 0.0
        %978 = vmatprep.subr.mxu0 0.0
        %979 = vmatpush1.msra.mxu0 0.0
        %980 = vmatprep.subr.mxu0 0.0
        %981 = vmatpush1.msra.mxu0 0.0
        %982 = vmatprep.subr.mxu0 0.0
        %983 = vmatpush1.msra.mxu0 0.0
        %984 = vmatprep.subr.mxu0 0.0
        %985 = vmatpush1.msra.mxu0 0.0
        %986 = vmatprep.subr.mxu0 0.0
        %987 = vmatpush1.msra.mxu0 0.0
        %988 = vmatprep.subr.mxu0 0.0
        %989 = vmatpush1.msra.mxu0 0.0
        %990 = vmatprep.mubr.f32.mxu0 0.0
        %991 = vmatmul.mubr.f32.gmra.mrb[0].mxu0 %v289
        %v992 = vpop.f32.mrb[0].mxu0
        %v993 = vadd.f32 0.0, %v992
        %v994 = vpop.f32.mrb[0].mxu0
        %v995 = vadd.f32 0.0, %v994
        %996 = vdwg.mxu0
        %997 = vmatprep.subr.mxu0 %v922
        %998 = vmatpush1.msra.mxu0 %v920
        %999 = vmatprep.subr.mxu0 0.0
        %1000 = vmatpush1.msra.mxu0 0.0
        %1001 = vmatprep.subr.mxu0 0.0
        %1002 = vmatpush1.msra.mxu0 0.0
        %1003 = vmatprep.subr.mxu0 0.0
        %1004 = vmatpush1.msra.mxu0 0.0
        %1005 = vmatprep.subr.mxu0 0.0
        %1006 = vmatpush1.msra.mxu0 0.0
        %1007 = vmatprep.subr.mxu0 0.0
        %1008 = vmatpush1.msra.mxu0 0.0
        %1009 = vmatprep.subr.mxu0 0.0
        %1010 = vmatpush1.msra.mxu0 0.0
        %1011 = vmatprep.subr.mxu0 0.0
        %1012 = vmatpush1.msra.mxu0 0.0
        %1013 = vmatprep.subr.mxu0 0.0
        %1014 = vmatpush1.msra.mxu0 0.0
        %1015 = vmatprep.subr.mxu0 0.0
        %1016 = vmatpush1.msra.mxu0 0.0
        %1017 = vmatprep.subr.mxu0 0.0
        %1018 = vmatpush1.msra.mxu0 0.0
        %1019 = vmatprep.subr.mxu0 0.0
        %1020 = vmatpush1.msra.mxu0 0.0
        %1021 = vmatprep.subr.mxu0 0.0
        %1022 = vmatpush1.msra.mxu0 0.0
        %1023 = vmatprep.subr.mxu0 0.0
        %1024 = vmatpush1.msra.mxu0 0.0
        %1025 = vmatprep.subr.mxu0 0.0
        %1026 = vmatpush1.msra.mxu0 0.0
        %1027 = vmatprep.subr.mxu0 0.0
        %1028 = vmatpush1.msra.mxu0 0.0
        %1029 = vmatprep.subr.mxu0 0.0
        %1030 = vmatpush1.msra.mxu0 0.0
        %1031 = vmatprep.subr.mxu0 0.0
        %1032 = vmatpush1.msra.mxu0 0.0
        %1033 = vmatprep.subr.mxu0 0.0
        %1034 = vmatpush1.msra.mxu0 0.0
        %1035 = vmatprep.subr.mxu0 0.0
        %1036 = vmatpush1.msra.mxu0 0.0
        %1037 = vmatprep.subr.mxu0 0.0
        %1038 = vmatpush1.msra.mxu0 0.0
        %1039 = vmatprep.subr.mxu0 0.0
        %1040 = vmatpush1.msra.mxu0 0.0
        %1041 = vmatprep.subr.mxu0 0.0
        %1042 = vmatpush1.msra.mxu0 0.0
        %1043 = vmatprep.subr.mxu0 0.0
        %1044 = vmatpush1.msra.mxu0 0.0
        %1045 = vmatprep.subr.mxu0 0.0
        %1046 = vmatpush1.msra.mxu0 0.0
        %1047 = vmatprep.subr.mxu0 0.0
        %1048 = vmatpush1.msra.mxu0 0.0
        %1049 = vmatprep.subr.mxu0 0.0
        %1050 = vmatpush1.msra.mxu0 0.0
        %1051 = vmatprep.subr.mxu0 0.0
        %1052 = vmatpush1.msra.mxu0 0.0
        %1053 = vmatprep.subr.mxu0 0.0
        %1054 = vmatpush1.msra.mxu0 0.0
        %1055 = vmatprep.subr.mxu0 0.0
        %1056 = vmatpush1.msra.mxu0 0.0
        %1057 = vmatprep.subr.mxu0 0.0
        %1058 = vmatpush1.msra.mxu0 0.0
        %1059 = vmatprep.subr.mxu0 0.0
        %1060 = vmatpush1.msra.mxu0 0.0
        %1061 = vmatprep.mubr.f32.mxu0 0.0
        %1062 = vmatmul.mubr.f32.gmra.mrb[0].mxu0 %v289
        %v1063 = vpop.f32.mrb[0].mxu0
        %v1064 = vadd.f32 0.0, %v1063
        %v1065 = vpop.f32.mrb[0].mxu0
        %v1066 = vadd.f32 0.0, %v1065
        %1067 = vdwg.mxu0
        %1068 = vmatprep.subr.mxu0 0.0
        %1069 = vmatpush1.msra.mxu0 %v924
        %1070 = vmatprep.subr.mxu0 0.0
        %1071 = vmatpush1.msra.mxu0 0.0
        %1072 = vmatprep.subr.mxu0 0.0
        %1073 = vmatpush1.msra.mxu0 0.0
        %1074 = vmatprep.subr.mxu0 0.0
        %1075 = vmatpush1.msra.mxu0 0.0
        %1076 = vmatprep.subr.mxu0 0.0
        %1077 = vmatpush1.msra.mxu0 0.0
        %1078 = vmatprep.subr.mxu0 0.0
        %1079 = vmatpush1.msra.mxu0 0.0
        %1080 = vmatprep.subr.mxu0 0.0
        %1081 = vmatpush1.msra.mxu0 0.0
        %1082 = vmatprep.subr.mxu0 0.0
        %1083 = vmatpush1.msra.mxu0 0.0
        %1084 = vmatprep.subr.mxu0 0.0
        %1085 = vmatpush1.msra.mxu0 0.0
        %1086 = vmatprep.subr.mxu0 0.0
        %1087 = vmatpush1.msra.mxu0 0.0
        %1088 = vmatprep.subr.mxu0 0.0
        %1089 = vmatpush1.msra.mxu0 0.0
        %1090 = vmatprep.subr.mxu0 0.0
        %1091 = vmatpush1.msra.mxu0 0.0
        %1092 = vmatprep.subr.mxu0 0.0
        %1093 = vmatpush1.msra.mxu0 0.0
        %1094 = vmatprep.subr.mxu0 0.0
        %1095 = vmatpush1.msra.mxu0 0.0
        %1096 = vmatprep.subr.mxu0 0.0
        %1097 = vmatpush1.msra.mxu0 0.0
        %1098 = vmatprep.subr.mxu0 0.0
        %1099 = vmatpush1.msra.mxu0 0.0
        %1100 = vmatprep.subr.mxu0 0.0
        %1101 = vmatpush1.msra.mxu0 0.0
        %1102 = vmatprep.subr.mxu0 0.0
        %1103 = vmatpush1.msra.mxu0 0.0
        %1104 = vmatprep.subr.mxu0 0.0
        %1105 = vmatpush1.msra.mxu0 0.0
        %1106 = vmatprep.subr.mxu0 0.0
        %1107 = vmatpush1.msra.mxu0 0.0
        %1108 = vmatprep.subr.mxu0 0.0
        %1109 = vmatpush1.msra.mxu0 0.0
        %1110 = vmatprep.subr.mxu0 0.0
        %1111 = vmatpush1.msra.mxu0 0.0
        %1112 = vmatprep.subr.mxu0 0.0
        %1113 = vmatpush1.msra.mxu0 0.0
        %1114 = vmatprep.subr.mxu0 0.0
        %1115 = vmatpush1.msra.mxu0 0.0
        %1116 = vmatprep.subr.mxu0 0.0
        %1117 = vmatpush1.msra.mxu0 0.0
        %1118 = vmatprep.subr.mxu0 0.0
        %1119 = vmatpush1.msra.mxu0 0.0
        %1120 = vmatprep.subr.mxu0 0.0
        %1121 = vmatpush1.msra.mxu0 0.0
        %1122 = vmatprep.subr.mxu0 0.0
        %1123 = vmatpush1.msra.mxu0 0.0
        %1124 = vmatprep.subr.mxu0 0.0
        %1125 = vmatpush1.msra.mxu0 0.0
        %1126 = vmatprep.subr.mxu0 0.0
        %1127 = vmatpush1.msra.mxu0 0.0
        %1128 = vmatprep.subr.mxu0 0.0
        %1129 = vmatpush1.msra.mxu0 0.0
        %1130 = vmatprep.subr.mxu0 0.0
        %1131 = vmatpush1.msra.mxu0 0.0
        %1132 = vmatprep.mubr.f32.mxu0 0.0
        %1133 = vmatmul.mubr.f32.gmra.mrb[0].mxu0 %v289
        %v1134 = vpop.f32.mrb[0].mxu0
        %v1135 = vadd.f32 0.0, %v1134
        %v1136 = vpop.f32.mrb[0].mxu0
        %1137 = vdwg.mxu0
        %1138 = vst [vmem:[%s253 + $0x80] sm:$0xff] %v993
        %1139 = vst [vmem:[%s253 + $0x88] sm:$0xff] %v995
        %1140 = vst [vmem:[%s253 + $0x90] sm:$0xff] %v1064
        %1141 = vst [vmem:[%s253 + $0x98] sm:$0xff] %v1066
        %1142 = vst [vmem:[%s253 + $0xa0] sm:$0xff] %v1135
        %s1143 = scalar_lea.vmem %s232, 84 [#allocation2]
        %v1144 = vld [vmem:[%s1143] sm:$0xff]
        %v1145 = vld [vmem:[%s1143 + $0x8] sm:$0xff]
        %v1146 = vld [vmem:[%s1143 + $0x10] sm:$0xff]
        %v1147 = vld [vmem:[%s1143 + $0x18] sm:$0xff]
        %v1148 = vld [vmem:[%s1143 + $0x20] sm:$0xff]
        %v1149 = vld [vmem:[%s1143 + $0x28] sm:$0xff]
        %v1150 = vld [vmem:[%s1143 + $0x30] sm:$0xff]
        %v1151 = vld [vmem:[%s1143 + $0x38] sm:$0xff]
        %v1160 = vcombine.high %v1144, %v1144
        %v1161 = vcombine.high %v1145, %v1145
        %v1162 = vcombine.high %v1146, %v1146
        %v1163 = vcombine.high %v1147, %v1147
        %v1164 = vcombine.high %v1148, %v1148
        %v1165 = vcombine.high %v1149, %v1149
        %v1166 = vcombine.high %v1150, %v1150
        %v1167 = vcombine.high %v1151, %v1151
        %v1168 = vsel %vm291, %v1144, 0
        %v1170 = vsel %vm291, %v1160, 0
        %v1172 = vsel %vm291, %v1145, 0
        %v1174 = vsel %vm291, %v1161, 0
        %v1176 = vsel %vm291, %v1146, 0
        %v1178 = vsel %vm291, %v1162, 0
        %v1180 = vsel %vm291, %v1147, 0
        %v1182 = vsel %vm291, %v1163, 0
        %v1184 = vsel %vm291, %v1148, 0
        %v1186 = vsel %vm291, %v1164, 0
        %v1188 = vsel %vm291, %v1149, 0
        %v1190 = vsel %vm291, %v1165, 0
        %v1192 = vsel %vm291, %v1150, 0
        %v1194 = vsel %vm291, %v1166, 0
        %v1196 = vsel %vm291, %v1151, 0
        %v1198 = vsel %vm291, %v1167, 0
        %1200 = vmatprep.subr.mxu0 %v1170
        %1201 = vmatpush1.msra.mxu0 %v1168
        %1202 = vmatprep.subr.mxu0 0.0
        %1203 = vmatpush1.msra.mxu0 0.0
        %1204 = vmatprep.subr.mxu0 0.0
        %1205 = vmatpush1.msra.mxu0 0.0
        %1206 = vmatprep.subr.mxu0 0.0
        %1207 = vmatpush1.msra.mxu0 0.0
        %1208 = vmatprep.subr.mxu0 0.0
        %1209 = vmatpush1.msra.mxu0 0.0
        %1210 = vmatprep.subr.mxu0 0.0
        %1211 = vmatpush1.msra.mxu0 0.0
        %1212 = vmatprep.subr.mxu0 0.0
        %1213 = vmatpush1.msra.mxu0 0.0
        %1214 = vmatprep.subr.mxu0 0.0
        %1215 = vmatpush1.msra.mxu0 0.0
        %1216 = vmatprep.subr.mxu0 0.0
        %1217 = vmatpush1.msra.mxu0 0.0
        %1218 = vmatprep.subr.mxu0 0.0
        %1219 = vmatpush1.msra.mxu0 0.0
        %1220 = vmatprep.subr.mxu0 0.0
        %1221 = vmatpush1.msra.mxu0 0.0
        %1222 = vmatprep.subr.mxu0 0.0
        %1223 = vmatpush1.msra.mxu0 0.0
        %1224 = vmatprep.subr.mxu0 0.0
        %1225 = vmatpush1.msra.mxu0 0.0
        %1226 = vmatprep.subr.mxu0 0.0
        %1227 = vmatpush1.msra.mxu0 0.0
        %1228 = vmatprep.subr.mxu0 0.0
        %1229 = vmatpush1.msra.mxu0 0.0
        %1230 = vmatprep.subr.mxu0 0.0
        %1231 = vmatpush1.msra.mxu0 0.0
        %1232 = vmatprep.subr.mxu0 0.0
        %1233 = vmatpush1.msra.mxu0 0.0
        %1234 = vmatprep.subr.mxu0 0.0
        %1235 = vmatpush1.msra.mxu0 0.0
        %1236 = vmatprep.subr.mxu0 0.0
        %1237 = vmatpush1.msra.mxu0 0.0
        %1238 = vmatprep.subr.mxu0 0.0
        %1239 = vmatpush1.msra.mxu0 0.0
        %1240 = vmatprep.subr.mxu0 0.0
        %1241 = vmatpush1.msra.mxu0 0.0
        %1242 = vmatprep.subr.mxu0 0.0
        %1243 = vmatpush1.msra.mxu0 0.0
        %1244 = vmatprep.subr.mxu0 0.0
        %1245 = vmatpush1.msra.mxu0 0.0
        %1246 = vmatprep.subr.mxu0 0.0
        %1247 = vmatpush1.msra.mxu0 0.0
        %1248 = vmatprep.subr.mxu0 0.0
        %1249 = vmatpush1.msra.mxu0 0.0
        %1250 = vmatprep.subr.mxu0 0.0
        %1251 = vmatpush1.msra.mxu0 0.0
        %1252 = vmatprep.subr.mxu0 0.0
        %1253 = vmatpush1.msra.mxu0 0.0
        %1254 = vmatprep.subr.mxu0 0.0
        %1255 = vmatpush1.msra.mxu0 0.0
        %1256 = vmatprep.subr.mxu0 0.0
        %1257 = vmatpush1.msra.mxu0 0.0
        %1258 = vmatprep.subr.mxu0 0.0
        %1259 = vmatpush1.msra.mxu0 0.0
        %1260 = vmatprep.subr.mxu0 0.0
        %1261 = vmatpush1.msra.mxu0 0.0
        %1262 = vmatprep.subr.mxu0 0.0
        %1263 = vmatpush1.msra.mxu0 0.0
        %1264 = vmatprep.mubr.f32.mxu0 0.0
        %1265 = vmatmul.mubr.f32.gmra.mrb[0].mxu0 %v289
        %v1266 = vpop.f32.mrb[0].mxu0
        %v1267 = vadd.f32 0.0, %v1266
        %v1268 = vpop.f32.mrb[0].mxu0
        %v1269 = vadd.f32 0.0, %v1268
        %1270 = vdwg.mxu0
        %1271 = vmatprep.subr.mxu0 %v1174
        %1272 = vmatpush1.msra.mxu0 %v1172
        %1273 = vmatprep.subr.mxu0 0.0
        %1274 = vmatpush1.msra.mxu0 0.0
        %1275 = vmatprep.subr.mxu0 0.0
        %1276 = vmatpush1.msra.mxu0 0.0
        %1277 = vmatprep.subr.mxu0 0.0
        %1278 = vmatpush1.msra.mxu0 0.0
        %1279 = vmatprep.subr.mxu0 0.0
        %1280 = vmatpush1.msra.mxu0 0.0
        %1281 = vmatprep.subr.mxu0 0.0
        %1282 = vmatpush1.msra.mxu0 0.0
        %1283 = vmatprep.subr.mxu0 0.0
        %1284 = vmatpush1.msra.mxu0 0.0
        %1285 = vmatprep.subr.mxu0 0.0
        %1286 = vmatpush1.msra.mxu0 0.0
        %1287 = vmatprep.subr.mxu0 0.0
        %1288 = vmatpush1.msra.mxu0 0.0
        %1289 = vmatprep.subr.mxu0 0.0
        %1290 = vmatpush1.msra.mxu0 0.0
        %1291 = vmatprep.subr.mxu0 0.0
        %1292 = vmatpush1.msra.mxu0 0.0
        %1293 = vmatprep.subr.mxu0 0.0
        %1294 = vmatpush1.msra.mxu0 0.0
        %1295 = vmatprep.subr.mxu0 0.0
        %1296 = vmatpush1.msra.mxu0 0.0
        %1297 = vmatprep.subr.mxu0 0.0
        %1298 = vmatpush1.msra.mxu0 0.0
        %1299 = vmatprep.subr.mxu0 0.0
        %1300 = vmatpush1.msra.mxu0 0.0
        %1301 = vmatprep.subr.mxu0 0.0
        %1302 = vmatpush1.msra.mxu0 0.0
        %1303 = vmatprep.subr.mxu0 0.0
        %1304 = vmatpush1.msra.mxu0 0.0
        %1305 = vmatprep.subr.mxu0 0.0
        %1306 = vmatpush1.msra.mxu0 0.0
        %1307 = vmatprep.subr.mxu0 0.0
        %1308 = vmatpush1.msra.mxu0 0.0
        %1309 = vmatprep.subr.mxu0 0.0
        %1310 = vmatpush1.msra.mxu0 0.0
        %1311 = vmatprep.subr.mxu0 0.0
        %1312 = vmatpush1.msra.mxu0 0.0
        %1313 = vmatprep.subr.mxu0 0.0
        %1314 = vmatpush1.msra.mxu0 0.0
        %1315 = vmatprep.subr.mxu0 0.0
        %1316 = vmatpush1.msra.mxu0 0.0
        %1317 = vmatprep.subr.mxu0 0.0
        %1318 = vmatpush1.msra.mxu0 0.0
        %1319 = vmatprep.subr.mxu0 0.0
        %1320 = vmatpush1.msra.mxu0 0.0
        %1321 = vmatprep.subr.mxu0 0.0
        %1322 = vmatpush1.msra.mxu0 0.0
        %1323 = vmatprep.subr.mxu0 0.0
        %1324 = vmatpush1.msra.mxu0 0.0
        %1325 = vmatprep.subr.mxu0 0.0
        %1326 = vmatpush1.msra.mxu0 0.0
        %1327 = vmatprep.subr.mxu0 0.0
        %1328 = vmatpush1.msra.mxu0 0.0
        %1329 = vmatprep.subr.mxu0 0.0
        %1330 = vmatpush1.msra.mxu0 0.0
        %1331 = vmatprep.subr.mxu0 0.0
        %1332 = vmatpush1.msra.mxu0 0.0
        %1333 = vmatprep.subr.mxu0 0.0
        %1334 = vmatpush1.msra.mxu0 0.0
        %1335 = vmatprep.mubr.f32.mxu0 0.0
        %1336 = vmatmul.mubr.f32.gmra.mrb[0].mxu0 %v289
        %v1337 = vpop.f32.mrb[0].mxu0
        %v1338 = vadd.f32 0.0, %v1337
        %v1339 = vpop.f32.mrb[0].mxu0
        %v1340 = vadd.f32 0.0, %v1339
        %1341 = vdwg.mxu0
        %1342 = vmatprep.subr.mxu0 %v1178
        %1343 = vmatpush1.msra.mxu0 %v1176
        %1344 = vmatprep.subr.mxu0 0.0
        %1345 = vmatpush1.msra.mxu0 0.0
        %1346 = vmatprep.subr.mxu0 0.0
        %1347 = vmatpush1.msra.mxu0 0.0
        %1348 = vmatprep.subr.mxu0 0.0
        %1349 = vmatpush1.msra.mxu0 0.0
        %1350 = vmatprep.subr.mxu0 0.0
        %1351 = vmatpush1.msra.mxu0 0.0
        %1352 = vmatprep.subr.mxu0 0.0
        %1353 = vmatpush1.msra.mxu0 0.0
        %1354 = vmatprep.subr.mxu0 0.0
        %1355 = vmatpush1.msra.mxu0 0.0
        %1356 = vmatprep.subr.mxu0 0.0
        %1357 = vmatpush1.msra.mxu0 0.0
        %1358 = vmatprep.subr.mxu0 0.0
        %1359 = vmatpush1.msra.mxu0 0.0
        %1360 = vmatprep.subr.mxu0 0.0
        %1361 = vmatpush1.msra.mxu0 0.0
        %1362 = vmatprep.subr.mxu0 0.0
        %1363 = vmatpush1.msra.mxu0 0.0
        %1364 = vmatprep.subr.mxu0 0.0
        %1365 = vmatpush1.msra.mxu0 0.0
        %1366 = vmatprep.subr.mxu0 0.0
        %1367 = vmatpush1.msra.mxu0 0.0
        %1368 = vmatprep.subr.mxu0 0.0
        %1369 = vmatpush1.msra.mxu0 0.0
        %1370 = vmatprep.subr.mxu0 0.0
        %1371 = vmatpush1.msra.mxu0 0.0
        %1372 = vmatprep.subr.mxu0 0.0
        %1373 = vmatpush1.msra.mxu0 0.0
        %1374 = vmatprep.subr.mxu0 0.0
        %1375 = vmatpush1.msra.mxu0 0.0
        %1376 = vmatprep.subr.mxu0 0.0
        %1377 = vmatpush1.msra.mxu0 0.0
        %1378 = vmatprep.subr.mxu0 0.0
        %1379 = vmatpush1.msra.mxu0 0.0
        %1380 = vmatprep.subr.mxu0 0.0
        %1381 = vmatpush1.msra.mxu0 0.0
        %1382 = vmatprep.subr.mxu0 0.0
        %1383 = vmatpush1.msra.mxu0 0.0
        %1384 = vmatprep.subr.mxu0 0.0
        %1385 = vmatpush1.msra.mxu0 0.0
        %1386 = vmatprep.subr.mxu0 0.0
        %1387 = vmatpush1.msra.mxu0 0.0
        %1388 = vmatprep.subr.mxu0 0.0
        %1389 = vmatpush1.msra.mxu0 0.0
        %1390 = vmatprep.subr.mxu0 0.0
        %1391 = vmatpush1.msra.mxu0 0.0
        %1392 = vmatprep.subr.mxu0 0.0
        %1393 = vmatpush1.msra.mxu0 0.0
        %1394 = vmatprep.subr.mxu0 0.0
        %1395 = vmatpush1.msra.mxu0 0.0
        %1396 = vmatprep.subr.mxu0 0.0
        %1397 = vmatpush1.msra.mxu0 0.0
        %1398 = vmatprep.subr.mxu0 0.0
        %1399 = vmatpush1.msra.mxu0 0.0
        %1400 = vmatprep.subr.mxu0 0.0
        %1401 = vmatpush1.msra.mxu0 0.0
        %1402 = vmatprep.subr.mxu0 0.0
        %1403 = vmatpush1.msra.mxu0 0.0
        %1404 = vmatprep.subr.mxu0 0.0
        %1405 = vmatpush1.msra.mxu0 0.0
        %1406 = vmatprep.mubr.f32.mxu0 0.0
        %1407 = vmatmul.mubr.f32.gmra.mrb[0].mxu0 %v289
        %v1408 = vpop.f32.mrb[0].mxu0
        %v1409 = vadd.f32 0.0, %v1408
        %v1410 = vpop.f32.mrb[0].mxu0
        %v1411 = vadd.f32 0.0, %v1410
        %1412 = vdwg.mxu0
        %1413 = vmatprep.subr.mxu0 %v1182
        %1414 = vmatpush1.msra.mxu0 %v1180
        %1415 = vmatprep.subr.mxu0 0.0
        %1416 = vmatpush1.msra.mxu0 0.0
        %1417 = vmatprep.subr.mxu0 0.0
        %1418 = vmatpush1.msra.mxu0 0.0
        %1419 = vmatprep.subr.mxu0 0.0
        %1420 = vmatpush1.msra.mxu0 0.0
        %1421 = vmatprep.subr.mxu0 0.0
        %1422 = vmatpush1.msra.mxu0 0.0
        %1423 = vmatprep.subr.mxu0 0.0
        %1424 = vmatpush1.msra.mxu0 0.0
        %1425 = vmatprep.subr.mxu0 0.0
        %1426 = vmatpush1.msra.mxu0 0.0
        %1427 = vmatprep.subr.mxu0 0.0
        %1428 = vmatpush1.msra.mxu0 0.0
        %1429 = vmatprep.subr.mxu0 0.0
        %1430 = vmatpush1.msra.mxu0 0.0
        %1431 = vmatprep.subr.mxu0 0.0
        %1432 = vmatpush1.msra.mxu0 0.0
        %1433 = vmatprep.subr.mxu0 0.0
        %1434 = vmatpush1.msra.mxu0 0.0
        %1435 = vmatprep.subr.mxu0 0.0
        %1436 = vmatpush1.msra.mxu0 0.0
        %1437 = vmatprep.subr.mxu0 0.0
        %1438 = vmatpush1.msra.mxu0 0.0
        %1439 = vmatprep.subr.mxu0 0.0
        %1440 = vmatpush1.msra.mxu0 0.0
        %1441 = vmatprep.subr.mxu0 0.0
        %1442 = vmatpush1.msra.mxu0 0.0
        %1443 = vmatprep.subr.mxu0 0.0
        %1444 = vmatpush1.msra.mxu0 0.0
        %1445 = vmatprep.subr.mxu0 0.0
        %1446 = vmatpush1.msra.mxu0 0.0
        %1447 = vmatprep.subr.mxu0 0.0
        %1448 = vmatpush1.msra.mxu0 0.0
        %1449 = vmatprep.subr.mxu0 0.0
        %1450 = vmatpush1.msra.mxu0 0.0
        %1451 = vmatprep.subr.mxu0 0.0
        %1452 = vmatpush1.msra.mxu0 0.0
        %1453 = vmatprep.subr.mxu0 0.0
        %1454 = vmatpush1.msra.mxu0 0.0
        %1455 = vmatprep.subr.mxu0 0.0
        %1456 = vmatpush1.msra.mxu0 0.0
        %1457 = vmatprep.subr.mxu0 0.0
        %1458 = vmatpush1.msra.mxu0 0.0
        %1459 = vmatprep.subr.mxu0 0.0
        %1460 = vmatpush1.msra.mxu0 0.0
        %1461 = vmatprep.subr.mxu0 0.0
        %1462 = vmatpush1.msra.mxu0 0.0
        %1463 = vmatprep.subr.mxu0 0.0
        %1464 = vmatpush1.msra.mxu0 0.0
        %1465 = vmatprep.subr.mxu0 0.0
        %1466 = vmatpush1.msra.mxu0 0.0
        %1467 = vmatprep.subr.mxu0 0.0
        %1468 = vmatpush1.msra.mxu0 0.0
        %1469 = vmatprep.subr.mxu0 0.0
        %1470 = vmatpush1.msra.mxu0 0.0
        %1471 = vmatprep.subr.mxu0 0.0
        %1472 = vmatpush1.msra.mxu0 0.0
        %1473 = vmatprep.subr.mxu0 0.0
        %1474 = vmatpush1.msra.mxu0 0.0
        %1475 = vmatprep.subr.mxu0 0.0
        %1476 = vmatpush1.msra.mxu0 0.0
        %1477 = vmatprep.mubr.f32.mxu0 0.0
        %1478 = vmatmul.mubr.f32.gmra.mrb[0].mxu0 %v289
        %v1479 = vpop.f32.mrb[0].mxu0
        %v1480 = vadd.f32 0.0, %v1479
        %v1481 = vpop.f32.mrb[0].mxu0
        %v1482 = vadd.f32 0.0, %v1481
        %1483 = vdwg.mxu0
        %1484 = vmatprep.subr.mxu0 %v1186
        %1485 = vmatpush1.msra.mxu0 %v1184
        %1486 = vmatprep.subr.mxu0 0.0
        %1487 = vmatpush1.msra.mxu0 0.0
        %1488 = vmatprep.subr.mxu0 0.0
        %1489 = vmatpush1.msra.mxu0 0.0
        %1490 = vmatprep.subr.mxu0 0.0
        %1491 = vmatpush1.msra.mxu0 0.0
        %1492 = vmatprep.subr.mxu0 0.0
        %1493 = vmatpush1.msra.mxu0 0.0
        %1494 = vmatprep.subr.mxu0 0.0
        %1495 = vmatpush1.msra.mxu0 0.0
        %1496 = vmatprep.subr.mxu0 0.0
        %1497 = vmatpush1.msra.mxu0 0.0
        %1498 = vmatprep.subr.mxu0 0.0
        %1499 = vmatpush1.msra.mxu0 0.0
        %1500 = vmatprep.subr.mxu0 0.0
        %1501 = vmatpush1.msra.mxu0 0.0
        %1502 = vmatprep.subr.mxu0 0.0
        %1503 = vmatpush1.msra.mxu0 0.0
        %1504 = vmatprep.subr.mxu0 0.0
        %1505 = vmatpush1.msra.mxu0 0.0
        %1506 = vmatprep.subr.mxu0 0.0
        %1507 = vmatpush1.msra.mxu0 0.0
        %1508 = vmatprep.subr.mxu0 0.0
        %1509 = vmatpush1.msra.mxu0 0.0
        %1510 = vmatprep.subr.mxu0 0.0
        %1511 = vmatpush1.msra.mxu0 0.0
        %1512 = vmatprep.subr.mxu0 0.0
        %1513 = vmatpush1.msra.mxu0 0.0
        %1514 = vmatprep.subr.mxu0 0.0
        %1515 = vmatpush1.msra.mxu0 0.0
        %1516 = vmatprep.subr.mxu0 0.0
        %1517 = vmatpush1.msra.mxu0 0.0
        %1518 = vmatprep.subr.mxu0 0.0
        %1519 = vmatpush1.msra.mxu0 0.0
        %1520 = vmatprep.subr.mxu0 0.0
        %1521 = vmatpush1.msra.mxu0 0.0
        %1522 = vmatprep.subr.mxu0 0.0
        %1523 = vmatpush1.msra.mxu0 0.0
        %1524 = vmatprep.subr.mxu0 0.0
        %1525 = vmatpush1.msra.mxu0 0.0
        %1526 = vmatprep.subr.mxu0 0.0
        %1527 = vmatpush1.msra.mxu0 0.0
        %1528 = vmatprep.subr.mxu0 0.0
        %1529 = vmatpush1.msra.mxu0 0.0
        %1530 = vmatprep.subr.mxu0 0.0
        %1531 = vmatpush1.msra.mxu0 0.0
        %1532 = vmatprep.subr.mxu0 0.0
        %1533 = vmatpush1.msra.mxu0 0.0
        %1534 = vmatprep.subr.mxu0 0.0
        %1535 = vmatpush1.msra.mxu0 0.0
        %1536 = vmatprep.subr.mxu0 0.0
        %1537 = vmatpush1.msra.mxu0 0.0
        %1538 = vmatprep.subr.mxu0 0.0
        %1539 = vmatpush1.msra.mxu0 0.0
        %1540 = vmatprep.subr.mxu0 0.0
        %1541 = vmatpush1.msra.mxu0 0.0
        %1542 = vmatprep.subr.mxu0 0.0
        %1543 = vmatpush1.msra.mxu0 0.0
        %1544 = vmatprep.subr.mxu0 0.0
        %1545 = vmatpush1.msra.mxu0 0.0
        %1546 = vmatprep.subr.mxu0 0.0
        %1547 = vmatpush1.msra.mxu0 0.0
        %1548 = vmatprep.mubr.f32.mxu0 0.0
        %1549 = vmatmul.mubr.f32.gmra.mrb[0].mxu0 %v289
        %v1550 = vpop.f32.mrb[0].mxu0
        %v1551 = vadd.f32 0.0, %v1550
        %v1552 = vpop.f32.mrb[0].mxu0
        %v1553 = vadd.f32 0.0, %v1552
        %1554 = vdwg.mxu0
        %1555 = vmatprep.subr.mxu0 %v1190
        %1556 = vmatpush1.msra.mxu0 %v1188
        %1557 = vmatprep.subr.mxu0 0.0
        %1558 = vmatpush1.msra.mxu0 0.0
        %1559 = vmatprep.subr.mxu0 0.0
        %1560 = vmatpush1.msra.mxu0 0.0
        %1561 = vmatprep.subr.mxu0 0.0
        %1562 = vmatpush1.msra.mxu0 0.0
        %1563 = vmatprep.subr.mxu0 0.0
        %1564 = vmatpush1.msra.mxu0 0.0
        %1565 = vmatprep.subr.mxu0 0.0
        %1566 = vmatpush1.msra.mxu0 0.0
        %1567 = vmatprep.subr.mxu0 0.0
        %1568 = vmatpush1.msra.mxu0 0.0
        %1569 = vmatprep.subr.mxu0 0.0
        %1570 = vmatpush1.msra.mxu0 0.0
        %1571 = vmatprep.subr.mxu0 0.0
        %1572 = vmatpush1.msra.mxu0 0.0
        %1573 = vmatprep.subr.mxu0 0.0
        %1574 = vmatpush1.msra.mxu0 0.0
        %1575 = vmatprep.subr.mxu0 0.0
        %1576 = vmatpush1.msra.mxu0 0.0
        %1577 = vmatprep.subr.mxu0 0.0
        %1578 = vmatpush1.msra.mxu0 0.0
        %1579 = vmatprep.subr.mxu0 0.0
        %1580 = vmatpush1.msra.mxu0 0.0
        %1581 = vmatprep.subr.mxu0 0.0
        %1582 = vmatpush1.msra.mxu0 0.0
        %1583 = vmatprep.subr.mxu0 0.0
        %1584 = vmatpush1.msra.mxu0 0.0
        %1585 = vmatprep.subr.mxu0 0.0
        %1586 = vmatpush1.msra.mxu0 0.0
        %1587 = vmatprep.subr.mxu0 0.0
        %1588 = vmatpush1.msra.mxu0 0.0
        %1589 = vmatprep.subr.mxu0 0.0
        %1590 = vmatpush1.msra.mxu0 0.0
        %1591 = vmatprep.subr.mxu0 0.0
        %1592 = vmatpush1.msra.mxu0 0.0
        %1593 = vmatprep.subr.mxu0 0.0
        %1594 = vmatpush1.msra.mxu0 0.0
        %1595 = vmatprep.subr.mxu0 0.0
        %1596 = vmatpush1.msra.mxu0 0.0
        %1597 = vmatprep.subr.mxu0 0.0
        %1598 = vmatpush1.msra.mxu0 0.0
        %1599 = vmatprep.subr.mxu0 0.0
        %1600 = vmatpush1.msra.mxu0 0.0
        %1601 = vmatprep.subr.mxu0 0.0
        %1602 = vmatpush1.msra.mxu0 0.0
        %1603 = vmatprep.subr.mxu0 0.0
        %1604 = vmatpush1.msra.mxu0 0.0
        %1605 = vmatprep.subr.mxu0 0.0
        %1606 = vmatpush1.msra.mxu0 0.0
        %1607 = vmatprep.subr.mxu0 0.0
        %1608 = vmatpush1.msra.mxu0 0.0
        %1609 = vmatprep.subr.mxu0 0.0
        %1610 = vmatpush1.msra.mxu0 0.0
        %1611 = vmatprep.subr.mxu0 0.0
        %1612 = vmatpush1.msra.mxu0 0.0
        %1613 = vmatprep.subr.mxu0 0.0
        %1614 = vmatpush1.msra.mxu0 0.0
        %1615 = vmatprep.subr.mxu0 0.0
        %1616 = vmatpush1.msra.mxu0 0.0
        %1617 = vmatprep.subr.mxu0 0.0
        %1618 = vmatpush1.msra.mxu0 0.0
        %1619 = vmatprep.mubr.f32.mxu0 0.0
        %1620 = vmatmul.mubr.f32.gmra.mrb[0].mxu0 %v289
        %v1621 = vpop.f32.mrb[0].mxu0
        %v1622 = vadd.f32 0.0, %v1621
        %v1623 = vpop.f32.mrb[0].mxu0
        %v1624 = vadd.f32 0.0, %v1623
        %1625 = vdwg.mxu0
        %1626 = vmatprep.subr.mxu0 %v1194
        %1627 = vmatpush1.msra.mxu0 %v1192
        %1628 = vmatprep.subr.mxu0 0.0
        %1629 = vmatpush1.msra.mxu0 0.0
        %1630 = vmatprep.subr.mxu0 0.0
        %1631 = vmatpush1.msra.mxu0 0.0
        %1632 = vmatprep.subr.mxu0 0.0
        %1633 = vmatpush1.msra.mxu0 0.0
        %1634 = vmatprep.subr.mxu0 0.0
        %1635 = vmatpush1.msra.mxu0 0.0
        %1636 = vmatprep.subr.mxu0 0.0
        %1637 = vmatpush1.msra.mxu0 0.0
        %1638 = vmatprep.subr.mxu0 0.0
        %1639 = vmatpush1.msra.mxu0 0.0
        %1640 = vmatprep.subr.mxu0 0.0
        %1641 = vmatpush1.msra.mxu0 0.0
        %1642 = vmatprep.subr.mxu0 0.0
        %1643 = vmatpush1.msra.mxu0 0.0
        %1644 = vmatprep.subr.mxu0 0.0
        %1645 = vmatpush1.msra.mxu0 0.0
        %1646 = vmatprep.subr.mxu0 0.0
        %1647 = vmatpush1.msra.mxu0 0.0
        %1648 = vmatprep.subr.mxu0 0.0
        %1649 = vmatpush1.msra.mxu0 0.0
        %1650 = vmatprep.subr.mxu0 0.0
        %1651 = vmatpush1.msra.mxu0 0.0
        %1652 = vmatprep.subr.mxu0 0.0
        %1653 = vmatpush1.msra.mxu0 0.0
        %1654 = vmatprep.subr.mxu0 0.0
        %1655 = vmatpush1.msra.mxu0 0.0
        %1656 = vmatprep.subr.mxu0 0.0
        %1657 = vmatpush1.msra.mxu0 0.0
        %1658 = vmatprep.subr.mxu0 0.0
        %1659 = vmatpush1.msra.mxu0 0.0
        %1660 = vmatprep.subr.mxu0 0.0
        %1661 = vmatpush1.msra.mxu0 0.0
        %1662 = vmatprep.subr.mxu0 0.0
        %1663 = vmatpush1.msra.mxu0 0.0
        %1664 = vmatprep.subr.mxu0 0.0
        %1665 = vmatpush1.msra.mxu0 0.0
        %1666 = vmatprep.subr.mxu0 0.0
        %1667 = vmatpush1.msra.mxu0 0.0
        %1668 = vmatprep.subr.mxu0 0.0
        %1669 = vmatpush1.msra.mxu0 0.0
        %1670 = vmatprep.subr.mxu0 0.0
        %1671 = vmatpush1.msra.mxu0 0.0
        %1672 = vmatprep.subr.mxu0 0.0
        %1673 = vmatpush1.msra.mxu0 0.0
        %1674 = vmatprep.subr.mxu0 0.0
        %1675 = vmatpush1.msra.mxu0 0.0
        %1676 = vmatprep.subr.mxu0 0.0
        %1677 = vmatpush1.msra.mxu0 0.0
        %1678 = vmatprep.subr.mxu0 0.0
        %1679 = vmatpush1.msra.mxu0 0.0
        %1680 = vmatprep.subr.mxu0 0.0
        %1681 = vmatpush1.msra.mxu0 0.0
        %1682 = vmatprep.subr.mxu0 0.0
        %1683 = vmatpush1.msra.mxu0 0.0
        %1684 = vmatprep.subr.mxu0 0.0
        %1685 = vmatpush1.msra.mxu0 0.0
        %1686 = vmatprep.subr.mxu0 0.0
        %1687 = vmatpush1.msra.mxu0 0.0
        %1688 = vmatprep.subr.mxu0 0.0
        %1689 = vmatpush1.msra.mxu0 0.0
        %1690 = vmatprep.mubr.f32.mxu0 0.0
        %1691 = vmatmul.mubr.f32.gmra.mrb[0].mxu0 %v289
        %v1692 = vpop.f32.mrb[0].mxu0
        %v1693 = vadd.f32 0.0, %v1692
        %v1694 = vpop.f32.mrb[0].mxu0
        %v1695 = vadd.f32 0.0, %v1694
        %1696 = vdwg.mxu0
        %1697 = vmatprep.subr.mxu0 %v1198
        %1698 = vmatpush1.msra.mxu0 %v1196
        %1699 = vmatprep.subr.mxu0 0.0
        %1700 = vmatpush1.msra.mxu0 0.0
        %1701 = vmatprep.subr.mxu0 0.0
        %1702 = vmatpush1.msra.mxu0 0.0
        %1703 = vmatprep.subr.mxu0 0.0
        %1704 = vmatpush1.msra.mxu0 0.0
        %1705 = vmatprep.subr.mxu0 0.0
        %1706 = vmatpush1.msra.mxu0 0.0
        %1707 = vmatprep.subr.mxu0 0.0
        %1708 = vmatpush1.msra.mxu0 0.0
        %1709 = vmatprep.subr.mxu0 0.0
        %1710 = vmatpush1.msra.mxu0 0.0
        %1711 = vmatprep.subr.mxu0 0.0
        %1712 = vmatpush1.msra.mxu0 0.0
        %1713 = vmatprep.subr.mxu0 0.0
        %1714 = vmatpush1.msra.mxu0 0.0
        %1715 = vmatprep.subr.mxu0 0.0
        %1716 = vmatpush1.msra.mxu0 0.0
        %1717 = vmatprep.subr.mxu0 0.0
        %1718 = vmatpush1.msra.mxu0 0.0
        %1719 = vmatprep.subr.mxu0 0.0
        %1720 = vmatpush1.msra.mxu0 0.0
        %1721 = vmatprep.subr.mxu0 0.0
        %1722 = vmatpush1.msra.mxu0 0.0
        %1723 = vmatprep.subr.mxu0 0.0
        %1724 = vmatpush1.msra.mxu0 0.0
        %1725 = vmatprep.subr.mxu0 0.0
        %1726 = vmatpush1.msra.mxu0 0.0
        %1727 = vmatprep.subr.mxu0 0.0
        %1728 = vmatpush1.msra.mxu0 0.0
        %1729 = vmatprep.subr.mxu0 0.0
        %1730 = vmatpush1.msra.mxu0 0.0
        %1731 = vmatprep.subr.mxu0 0.0
        %1732 = vmatpush1.msra.mxu0 0.0
        %1733 = vmatprep.subr.mxu0 0.0
        %1734 = vmatpush1.msra.mxu0 0.0
        %1735 = vmatprep.subr.mxu0 0.0
        %1736 = vmatpush1.msra.mxu0 0.0
        %1737 = vmatprep.subr.mxu0 0.0
        %1738 = vmatpush1.msra.mxu0 0.0
        %1739 = vmatprep.subr.mxu0 0.0
        %1740 = vmatpush1.msra.mxu0 0.0
        %1741 = vmatprep.subr.mxu0 0.0
        %1742 = vmatpush1.msra.mxu0 0.0
        %1743 = vmatprep.subr.mxu0 0.0
        %1744 = vmatpush1.msra.mxu0 0.0
        %1745 = vmatprep.subr.mxu0 0.0
        %1746 = vmatpush1.msra.mxu0 0.0
        %1747 = vmatprep.subr.mxu0 0.0
        %1748 = vmatpush1.msra.mxu0 0.0
        %1749 = vmatprep.subr.mxu0 0.0
        %1750 = vmatpush1.msra.mxu0 0.0
        %1751 = vmatprep.subr.mxu0 0.0
        %1752 = vmatpush1.msra.mxu0 0.0
        %1753 = vmatprep.subr.mxu0 0.0
        %1754 = vmatpush1.msra.mxu0 0.0
        %1755 = vmatprep.subr.mxu0 0.0
        %1756 = vmatpush1.msra.mxu0 0.0
        %1757 = vmatprep.subr.mxu0 0.0
        %1758 = vmatpush1.msra.mxu0 0.0
        %1759 = vmatprep.subr.mxu0 0.0
        %1760 = vmatpush1.msra.mxu0 0.0
        %1761 = vmatprep.mubr.f32.mxu0 0.0
        %1762 = vmatmul.mubr.f32.gmra.mrb[0].mxu0 %v289
        %v1763 = vpop.f32.mrb[0].mxu0
        %v1764 = vadd.f32 0.0, %v1763
        %v1765 = vpop.f32.mrb[0].mxu0
        %v1766 = vadd.f32 0.0, %v1765
        %1767 = vdwg.mxu0
        %s1768 = scalar_lea.vmem %s253, 168 [#allocation3]
        %1769 = vst [vmem:[%s1768] sm:$0xff] %v1267
        %1770 = vst [vmem:[%s1768 + $0x8] sm:$0xff] %v1269
        %1771 = vst [vmem:[%s1768 + $0x10] sm:$0xff] %v1338
        %1772 = vst [vmem:[%s1768 + $0x18] sm:$0xff] %v1340
        %1773 = vst [vmem:[%s1768 + $0x20] sm:$0xff] %v1409
        %1774 = vst [vmem:[%s1768 + $0x28] sm:$0xff] %v1411
        %1775 = vst [vmem:[%s1768 + $0x30] sm:$0xff] %v1480
        %1776 = vst [vmem:[%s1768 + $0x38] sm:$0xff] %v1482
        %1777 = vst [vmem:[%s1768 + $0x40] sm:$0xff] %v1551
        %1778 = vst [vmem:[%s1768 + $0x48] sm:$0xff] %v1553
        %1779 = vst [vmem:[%s1768 + $0x50] sm:$0xff] %v1622
        %1780 = vst [vmem:[%s1768 + $0x58] sm:$0xff] %v1624
        %1781 = vst [vmem:[%s1768 + $0x60] sm:$0xff] %v1693
        %1782 = vst [vmem:[%s1768 + $0x68] sm:$0xff] %v1695
        %1783 = vst [vmem:[%s1768 + $0x70] sm:$0xff] %v1764
        %1784 = vst [vmem:[%s1768 + $0x78] sm:$0xff] %v1766
        %v1785 = vld [vmem:[%s1143 + $0x40] sm:$0xff]
        %v1786 = vld [vmem:[%s1143 + $0x48] sm:$0xff]
        %v1787 = vld [vmem:[%s1143 + $0x50] sm:$0xf]
        %v1791 = vcombine.high %v1785, %v1785
        %v1792 = vcombine.high %v1786, %v1786
        %v1793 = vsel %vm291, %v1785, 0
        %v1795 = vsel %vm291, %v1791, 0
        %v1797 = vsel %vm291, %v1786, 0
        %v1799 = vsel %vm291, %v1792, 0
        %v1801 = vsel %vm291, %v1787, 0
        %1803 = vmatprep.subr.mxu0 %v1795
        %1804 = vmatpush1.msra.mxu0 %v1793
        %1805 = vmatprep.subr.mxu0 0.0
        %1806 = vmatpush1.msra.mxu0 0.0
        %1807 = vmatprep.subr.mxu0 0.0
        %1808 = vmatpush1.msra.mxu0 0.0
        %1809 = vmatprep.subr.mxu0 0.0
        %1810 = vmatpush1.msra.mxu0 0.0
        %1811 = vmatprep.subr.mxu0 0.0
        %1812 = vmatpush1.msra.mxu0 0.0
        %1813 = vmatprep.subr.mxu0 0.0
        %1814 = vmatpush1.msra.mxu0 0.0
        %1815 = vmatprep.subr.mxu0 0.0
        %1816 = vmatpush1.msra.mxu0 0.0
        %1817 = vmatprep.subr.mxu0 0.0
        %1818 = vmatpush1.msra.mxu0 0.0
        %1819 = vmatprep.subr.mxu0 0.0
        %1820 = vmatpush1.msra.mxu0 0.0
        %1821 = vmatprep.subr.mxu0 0.0
        %1822 = vmatpush1.msra.mxu0 0.0
        %1823 = vmatprep.subr.mxu0 0.0
        %1824 = vmatpush1.msra.mxu0 0.0
        %1825 = vmatprep.subr.mxu0 0.0
        %1826 = vmatpush1.msra.mxu0 0.0
        %1827 = vmatprep.subr.mxu0 0.0
        %1828 = vmatpush1.msra.mxu0 0.0
        %1829 = vmatprep.subr.mxu0 0.0
        %1830 = vmatpush1.msra.mxu0 0.0
        %1831 = vmatprep.subr.mxu0 0.0
        %1832 = vmatpush1.msra.mxu0 0.0
        %1833 = vmatprep.subr.mxu0 0.0
        %1834 = vmatpush1.msra.mxu0 0.0
        %1835 = vmatprep.subr.mxu0 0.0
        %1836 = vmatpush1.msra.mxu0 0.0
        %1837 = vmatprep.subr.mxu0 0.0
        %1838 = vmatpush1.msra.mxu0 0.0
        %1839 = vmatprep.subr.mxu0 0.0
        %1840 = vmatpush1.msra.mxu0 0.0
        %1841 = vmatprep.subr.mxu0 0.0
        %1842 = vmatpush1.msra.mxu0 0.0
        %1843 = vmatprep.subr.mxu0 0.0
        %1844 = vmatpush1.msra.mxu0 0.0
        %1845 = vmatprep.subr.mxu0 0.0
        %1846 = vmatpush1.msra.mxu0 0.0
        %1847 = vmatprep.subr.mxu0 0.0
        %1848 = vmatpush1.msra.mxu0 0.0
        %1849 = vmatprep.subr.mxu0 0.0
        %1850 = vmatpush1.msra.mxu0 0.0
        %1851 = vmatprep.subr.mxu0 0.0
        %1852 = vmatpush1.msra.mxu0 0.0
        %1853 = vmatprep.subr.mxu0 0.0
        %1854 = vmatpush1.msra.mxu0 0.0
        %1855 = vmatprep.subr.mxu0 0.0
        %1856 = vmatpush1.msra.mxu0 0.0
        %1857 = vmatprep.subr.mxu0 0.0
        %1858 = vmatpush1.msra.mxu0 0.0
        %1859 = vmatprep.subr.mxu0 0.0
        %1860 = vmatpush1.msra.mxu0 0.0
        %1861 = vmatprep.subr.mxu0 0.0
        %1862 = vmatpush1.msra.mxu0 0.0
        %1863 = vmatprep.subr.mxu0 0.0
        %1864 = vmatpush1.msra.mxu0 0.0
        %1865 = vmatprep.subr.mxu0 0.0
        %1866 = vmatpush1.msra.mxu0 0.0
        %1867 = vmatprep.mubr.f32.mxu0 0.0
        %1868 = vmatmul.mubr.f32.gmra.mrb[0].mxu0 %v289
        %v1869 = vpop.f32.mrb[0].mxu0
        %v1870 = vadd.f32 0.0, %v1869
        %v1871 = vpop.f32.mrb[0].mxu0
        %v1872 = vadd.f32 0.0, %v1871
        %1873 = vdwg.mxu0
        %1874 = vmatprep.subr.mxu0 %v1799
        %1875 = vmatpush1.msra.mxu0 %v1797
        %1876 = vmatprep.subr.mxu0 0.0
        %1877 = vmatpush1.msra.mxu0 0.0
        %1878 = vmatprep.subr.mxu0 0.0
        %1879 = vmatpush1.msra.mxu0 0.0
        %1880 = vmatprep.subr.mxu0 0.0
        %1881 = vmatpush1.msra.mxu0 0.0
        %1882 = vmatprep.subr.mxu0 0.0
        %1883 = vmatpush1.msra.mxu0 0.0
        %1884 = vmatprep.subr.mxu0 0.0
        %1885 = vmatpush1.msra.mxu0 0.0
        %1886 = vmatprep.subr.mxu0 0.0
        %1887 = vmatpush1.msra.mxu0 0.0
        %1888 = vmatprep.subr.mxu0 0.0
        %1889 = vmatpush1.msra.mxu0 0.0
        %1890 = vmatprep.subr.mxu0 0.0
        %1891 = vmatpush1.msra.mxu0 0.0
        %1892 = vmatprep.subr.mxu0 0.0
        %1893 = vmatpush1.msra.mxu0 0.0
        %1894 = vmatprep.subr.mxu0 0.0
        %1895 = vmatpush1.msra.mxu0 0.0
        %1896 = vmatprep.subr.mxu0 0.0
        %1897 = vmatpush1.msra.mxu0 0.0
        %1898 = vmatprep.subr.mxu0 0.0
        %1899 = vmatpush1.msra.mxu0 0.0
        %1900 = vmatprep.subr.mxu0 0.0
        %1901 = vmatpush1.msra.mxu0 0.0
        %1902 = vmatprep.subr.mxu0 0.0
        %1903 = vmatpush1.msra.mxu0 0.0
        %1904 = vmatprep.subr.mxu0 0.0
        %1905 = vmatpush1.msra.mxu0 0.0
        %1906 = vmatprep.subr.mxu0 0.0
        %1907 = vmatpush1.msra.mxu0 0.0
        %1908 = vmatprep.subr.mxu0 0.0
        %1909 = vmatpush1.msra.mxu0 0.0
        %1910 = vmatprep.subr.mxu0 0.0
        %1911 = vmatpush1.msra.mxu0 0.0
        %1912 = vmatprep.subr.mxu0 0.0
        %1913 = vmatpush1.msra.mxu0 0.0
        %1914 = vmatprep.subr.mxu0 0.0
        %1915 = vmatpush1.msra.mxu0 0.0
        %1916 = vmatprep.subr.mxu0 0.0
        %1917 = vmatpush1.msra.mxu0 0.0
        %1918 = vmatprep.subr.mxu0 0.0
        %1919 = vmatpush1.msra.mxu0 0.0
        %1920 = vmatprep.subr.mxu0 0.0
        %1921 = vmatpush1.msra.mxu0 0.0
        %1922 = vmatprep.subr.mxu0 0.0
        %1923 = vmatpush1.msra.mxu0 0.0
        %1924 = vmatprep.subr.mxu0 0.0
        %1925 = vmatpush1.msra.mxu0 0.0
        %1926 = vmatprep.subr.mxu0 0.0
        %1927 = vmatpush1.msra.mxu0 0.0
        %1928 = vmatprep.subr.mxu0 0.0
        %1929 = vmatpush1.msra.mxu0 0.0
        %1930 = vmatprep.subr.mxu0 0.0
        %1931 = vmatpush1.msra.mxu0 0.0
        %1932 = vmatprep.subr.mxu0 0.0
        %1933 = vmatpush1.msra.mxu0 0.0
        %1934 = vmatprep.subr.mxu0 0.0
        %1935 = vmatpush1.msra.mxu0 0.0
        %1936 = vmatprep.subr.mxu0 0.0
        %1937 = vmatpush1.msra.mxu0 0.0
        %1938 = vmatprep.mubr.f32.mxu0 0.0
        %1939 = vmatmul.mubr.f32.gmra.mrb[0].mxu0 %v289
        %v1940 = vpop.f32.mrb[0].mxu0
        %v1941 = vadd.f32 0.0, %v1940
        %v1942 = vpop.f32.mrb[0].mxu0
        %v1943 = vadd.f32 0.0, %v1942
        %1944 = vdwg.mxu0
        %1945 = vmatprep.subr.mxu0 0.0
        %1946 = vmatpush1.msra.mxu0 %v1801
        %1947 = vmatprep.subr.mxu0 0.0
        %1948 = vmatpush1.msra.mxu0 0.0
        %1949 = vmatprep.subr.mxu0 0.0
        %1950 = vmatpush1.msra.mxu0 0.0
        %1951 = vmatprep.subr.mxu0 0.0
        %1952 = vmatpush1.msra.mxu0 0.0
        %1953 = vmatprep.subr.mxu0 0.0
        %1954 = vmatpush1.msra.mxu0 0.0
        %1955 = vmatprep.subr.mxu0 0.0
        %1956 = vmatpush1.msra.mxu0 0.0
        %1957 = vmatprep.subr.mxu0 0.0
        %1958 = vmatpush1.msra.mxu0 0.0
        %1959 = vmatprep.subr.mxu0 0.0
        %1960 = vmatpush1.msra.mxu0 0.0
        %1961 = vmatprep.subr.mxu0 0.0
        %1962 = vmatpush1.msra.mxu0 0.0
        %1963 = vmatprep.subr.mxu0 0.0
        %1964 = vmatpush1.msra.mxu0 0.0
        %1965 = vmatprep.subr.mxu0 0.0
        %1966 = vmatpush1.msra.mxu0 0.0
        %1967 = vmatprep.subr.mxu0 0.0
        %1968 = vmatpush1.msra.mxu0 0.0
        %1969 = vmatprep.subr.mxu0 0.0
        %1970 = vmatpush1.msra.mxu0 0.0
        %1971 = vmatprep.subr.mxu0 0.0
        %1972 = vmatpush1.msra.mxu0 0.0
        %1973 = vmatprep.subr.mxu0 0.0
        %1974 = vmatpush1.msra.mxu0 0.0
        %1975 = vmatprep.subr.mxu0 0.0
        %1976 = vmatpush1.msra.mxu0 0.0
        %1977 = vmatprep.subr.mxu0 0.0
        %1978 = vmatpush1.msra.mxu0 0.0
        %1979 = vmatprep.subr.mxu0 0.0
        %1980 = vmatpush1.msra.mxu0 0.0
        %1981 = vmatprep.subr.mxu0 0.0
        %1982 = vmatpush1.msra.mxu0 0.0
        %1983 = vmatprep.subr.mxu0 0.0
        %1984 = vmatpush1.msra.mxu0 0.0
        %1985 = vmatprep.subr.mxu0 0.0
        %1986 = vmatpush1.msra.mxu0 0.0
        %1987 = vmatprep.subr.mxu0 0.0
        %1988 = vmatpush1.msra.mxu0 0.0
        %1989 = vmatprep.subr.mxu0 0.0
        %1990 = vmatpush1.msra.mxu0 0.0
        %1991 = vmatprep.subr.mxu0 0.0
        %1992 = vmatpush1.msra.mxu0 0.0
        %1993 = vmatprep.subr.mxu0 0.0
        %1994 = vmatpush1.msra.mxu0 0.0
        %1995 = vmatprep.subr.mxu0 0.0
        %1996 = vmatpush1.msra.mxu0 0.0
        %1997 = vmatprep.subr.mxu0 0.0
        %1998 = vmatpush1.msra.mxu0 0.0
        %1999 = vmatprep.subr.mxu0 0.0
        %2000 = vmatpush1.msra.mxu0 0.0
        %2001 = vmatprep.subr.mxu0 0.0
        %2002 = vmatpush1.msra.mxu0 0.0
        %2003 = vmatprep.subr.mxu0 0.0
        %2004 = vmatpush1.msra.mxu0 0.0
        %2005 = vmatprep.subr.mxu0 0.0
        %2006 = vmatpush1.msra.mxu0 0.0
        %2007 = vmatprep.subr.mxu0 0.0
        %2008 = vmatpush1.msra.mxu0 0.0
        %2009 = vmatprep.mubr.f32.mxu0 0.0
        %2010 = vmatmul.mubr.f32.gmra.mrb[0].mxu0 %v289
        %v2011 = vpop.f32.mrb[0].mxu0
        %v2012 = vadd.f32 0.0, %v2011
        %v2013 = vpop.f32.mrb[0].mxu0
        %2014 = vdwg.mxu0
        %2015 = vst [vmem:[%s1768 + $0x80] sm:$0xff] %v1870
        %2016 = vst [vmem:[%s1768 + $0x88] sm:$0xff] %v1872
        %2017 = vst [vmem:[%s1768 + $0x90] sm:$0xff] %v1941
        %2018 = vst [vmem:[%s1768 + $0x98] sm:$0xff] %v1943
        %2019 = vst [vmem:[%s1768 + $0xa0] sm:$0xff] %v2012
        %s2020 = sand.u32 %s100, 1
        %s2021 = sand.u32 %s100, 1
        %s2022 = smul.addr %s2021, 336
        %s2023 = scalar_lea.vmem [#allocation3], %s2022
        // Predicated region
        $region55: #{pusch_precode.1} parent=49 // pred_check
          %p2024 = pneg %p110
        $region56: #{pusch_precode.1} parent=49 // pred_check_branch
          %2026 = sbr.rel (%p2024) target = $region58
        $region57: #{pusch_precode.1} parent=49 // pred_region
          %s2027 = smul.u32 2, %s19
          %s2028 = smul.u32 21, %s20
          %s2029 = smul.addr %s18, 21
          %s2030 = sadd.s32 %s2028, %s2029
          %s2031 = smul.addr %s2027, 42
          %s2032 = sadd.s32 %s2030, %s2031
          %s2033 = smul.addr %s2032, 8
          %s2034 = scalar_lea.vmem %s2, %s2033
          // Predicated region
          $region59: #{pusch_precode.1} parent=57 // pred_check
            _
          $region60: #{pusch_precode.1} parent=57 // pred_check_branch
            %2036 = sbr.rel (0) target = $region62
          $region61: #{pusch_precode.1} parent=57 // pred_region
            // Predicated region
            $region63: #{pusch_precode.1} parent=61 // pred_check
              _
            $region64: #{pusch_precode.1} parent=61 // pred_check_branch
              %2038 = sbr.rel (0) target = $region66
            $region65: #{pusch_precode.1} parent=61 // pred_region
              loop: start=0, step=1, limit=1
              $region67: #{pusch_precode.1} parent=65 // loop_pre_header
                _
              $region68: #{pusch_precode.1} parent=65 // loop_header
                %s2040 = sphi 0, %s2044
                %p2041 = scmp.ge.s32.totalorder %s2040, 1
                %s2045 = sphi %s2023, %s2023
                %s2046 = sphi %s2034, %s2034
              $region69: #{pusch_precode.1} parent=65 // loop_header_branch
                %2043 = sbr.rel (%p2041) target = $region73
              $region70: #{pusch_precode.1} parent=65 // loop_body
                %v2047 = vld [vmem:[%s2045] sm:$0xff]
                %2048 = vst [vmem:[%s2046] sm:$0xff] %v2047
                %v2049 = vld [vmem:[%s2045 + $0x8] sm:$0xff]
                %2050 = vst [vmem:[%s2046 + $0x8] sm:$0xff] %v2049
                %v2051 = vld [vmem:[%s2045 + $0x10] sm:$0xff]
                %2052 = vst [vmem:[%s2046 + $0x10] sm:$0xff] %v2051
                %v2053 = vld [vmem:[%s2045 + $0x18] sm:$0xff]
                %2054 = vst [vmem:[%s2046 + $0x18] sm:$0xff] %v2053
                %v2055 = vld [vmem:[%s2045 + $0x20] sm:$0xff]
                %2056 = vst [vmem:[%s2046 + $0x20] sm:$0xff] %v2055
                %v2057 = vld [vmem:[%s2045 + $0x28] sm:$0xff]
                %2058 = vst [vmem:[%s2046 + $0x28] sm:$0xff] %v2057
                %v2059 = vld [vmem:[%s2045 + $0x30] sm:$0xff]
                %2060 = vst [vmem:[%s2046 + $0x30] sm:$0xff] %v2059
                %v2061 = vld [vmem:[%s2045 + $0x38] sm:$0xff]
                %2062 = vst [vmem:[%s2046 + $0x38] sm:$0xff] %v2061
                %v2063 = vld [vmem:[%s2045 + $0x40] sm:$0xff]
                %2064 = vst [vmem:[%s2046 + $0x40] sm:$0xff] %v2063
                %v2065 = vld [vmem:[%s2045 + $0x48] sm:$0xff]
                %2066 = vst [vmem:[%s2046 + $0x48] sm:$0xff] %v2065
                %v2067 = vld [vmem:[%s2045 + $0x50] sm:$0xff]
                %2068 = vst [vmem:[%s2046 + $0x50] sm:$0xff] %v2067
                %v2069 = vld [vmem:[%s2045 + $0x58] sm:$0xff]
                %2070 = vst [vmem:[%s2046 + $0x58] sm:$0xff] %v2069
                %v2071 = vld [vmem:[%s2045 + $0x60] sm:$0xff]
                %2072 = vst [vmem:[%s2046 + $0x60] sm:$0xff] %v2071
                %v2073 = vld [vmem:[%s2045 + $0x68] sm:$0xff]
                %2074 = vst [vmem:[%s2046 + $0x68] sm:$0xff] %v2073
                %v2075 = vld [vmem:[%s2045 + $0x70] sm:$0xff]
                %2076 = vst [vmem:[%s2046 + $0x70] sm:$0xff] %v2075
                %v2077 = vld [vmem:[%s2045 + $0x78] sm:$0xff]
                %2078 = vst [vmem:[%s2046 + $0x78] sm:$0xff] %v2077
                %v2079 = vld [vmem:[%s2045 + $0x80] sm:$0xff]
                %2080 = vst [vmem:[%s2046 + $0x80] sm:$0xff] %v2079
                %v2081 = vld [vmem:[%s2045 + $0x88] sm:$0xff]
                %2082 = vst [vmem:[%s2046 + $0x88] sm:$0xff] %v2081
                %v2083 = vld [vmem:[%s2045 + $0x90] sm:$0xff]
                %2084 = vst [vmem:[%s2046 + $0x90] sm:$0xff] %v2083
                %v2085 = vld [vmem:[%s2045 + $0x98] sm:$0xff]
                %2086 = vst [vmem:[%s2046 + $0x98] sm:$0xff] %v2085
                %v2087 = vld [vmem:[%s2045 + $0xa0] sm:$0xff]
                %2088 = vst [vmem:[%s2046 + $0xa0] sm:$0xff] %v2087
                %v2089 = vld [vmem:[%s2045 + $0xa8] sm:$0xff]
                %2090 = vst [vmem:[%s2046 + $0x150] sm:$0xff] %v2089
                %v2091 = vld [vmem:[%s2045 + $0xb0] sm:$0xff]
                %2092 = vst [vmem:[%s2046 + $0x158] sm:$0xff] %v2091
                %v2093 = vld [vmem:[%s2045 + $0xb8] sm:$0xff]
                %2094 = vst [vmem:[%s2046 + $0x160] sm:$0xff] %v2093
                %v2095 = vld [vmem:[%s2045 + $0xc0] sm:$0xff]
                %2096 = vst [vmem:[%s2046 + $0x168] sm:$0xff] %v2095
                %v2097 = vld [vmem:[%s2045 + $0xc8] sm:$0xff]
                %2098 = vst [vmem:[%s2046 + $0x170] sm:$0xff] %v2097
                %v2099 = vld [vmem:[%s2045 + $0xd0] sm:$0xff]
                %2100 = vst [vmem:[%s2046 + $0x178] sm:$0xff] %v2099
                %v2101 = vld [vmem:[%s2045 + $0xd8] sm:$0xff]
                %2102 = vst [vmem:[%s2046 + $0x180] sm:$0xff] %v2101
                %v2103 = vld [vmem:[%s2045 + $0xe0] sm:$0xff]
                %2104 = vst [vmem:[%s2046 + $0x188] sm:$0xff] %v2103
                %v2105 = vld [vmem:[%s2045 + $0xe8] sm:$0xff]
                %2106 = vst [vmem:[%s2046 + $0x190] sm:$0xff] %v2105
                %v2107 = vld [vmem:[%s2045 + $0xf0] sm:$0xff]
                %2108 = vst [vmem:[%s2046 + $0x198] sm:$0xff] %v2107
                %v2109 = vld [vmem:[%s2045 + $0xf8] sm:$0xff]
                %2110 = vst [vmem:[%s2046 + $0x1a0] sm:$0xff] %v2109
                %v2111 = vld [vmem:[%s2045 + $0x100] sm:$0xff]
                %2112 = vst [vmem:[%s2046 + $0x1a8] sm:$0xff] %v2111
                %v2113 = vld [vmem:[%s2045 + $0x108] sm:$0xff]
                %2114 = vst [vmem:[%s2046 + $0x1b0] sm:$0xff] %v2113
                %v2115 = vld [vmem:[%s2045 + $0x110] sm:$0xff]
                %2116 = vst [vmem:[%s2046 + $0x1b8] sm:$0xff] %v2115
                %v2117 = vld [vmem:[%s2045 + $0x118] sm:$0xff]
                %2118 = vst [vmem:[%s2046 + $0x1c0] sm:$0xff] %v2117
                %v2119 = vld [vmem:[%s2045 + $0x120] sm:$0xff]
                %2120 = vst [vmem:[%s2046 + $0x1c8] sm:$0xff] %v2119
                %v2121 = vld [vmem:[%s2045 + $0x128] sm:$0xff]
                %2122 = vst [vmem:[%s2046 + $0x1d0] sm:$0xff] %v2121
                %v2123 = vld [vmem:[%s2045 + $0x130] sm:$0xff]
                %2124 = vst [vmem:[%s2046 + $0x1d8] sm:$0xff] %v2123
                %v2125 = vld [vmem:[%s2045 + $0x138] sm:$0xff]
                %2126 = vst [vmem:[%s2046 + $0x1e0] sm:$0xff] %v2125
                %v2127 = vld [vmem:[%s2045 + $0x140] sm:$0xff]
                %2128 = vst [vmem:[%s2046 + $0x1e8] sm:$0xff] %v2127
                %v2129 = vld [vmem:[%s2045 + $0x148] sm:$0xff]
                %2130 = vst [vmem:[%s2046 + $0x1f0] sm:$0xff] %v2129
              $region71: #{pusch_precode.1} parent=65 // loop_footer
                %s2044 = sadd.s32 1, %s2040
              $region72: #{pusch_precode.1} parent=65 // loop_footer_branch
                %2039 = sbr.rel target = $region68
              $region73: #{pusch_precode.1} parent=65 // loop_exit
                _
            $region66: #{pusch_precode.1} parent=61 // pred_fallthru
              _
            // Predicated region
            $region74: #{pusch_precode.1} parent=61 // pred_check
              _
            $region75: #{pusch_precode.1} parent=61 // pred_check_branch
              %2132 = sbr.rel target = $region77
            $region76: #{pusch_precode.1} parent=61 // pred_region
              _
            $region77: #{pusch_precode.1} parent=61 // pred_fallthru
              _
          $region62: #{pusch_precode.1} parent=57 // pred_fallthru
            _
          %2133 = vnop
        $region58: #{pusch_precode.1} parent=49 // pred_fallthru
          _
      $region50: #{pusch_precode.1} parent=5 // pred_fallthru
        _
      %p2134 = scmp.le.s32.totalorder 2, %s8
      // Predicated region
      $region78: #{pusch_precode.1} parent=5 // pred_check
        %p2135 = pneg %p2134
      $region79: #{pusch_precode.1} parent=5 // pred_check_branch
        %2137 = sbr.rel (%p2135) target = $region81
      $region80: #{pusch_precode.1} parent=5 // pred_region
        %s2138 = ssub.s32 %s8, 2
        // Predicated region
        $region82: #{pusch_precode.1} parent=80 // pred_check
          %p2139 = pneg %p116
        $region83: #{pusch_precode.1} parent=80 // pred_check_branch
          %2141 = sbr.rel (%p2139) target = $region85
        $region84: #{pusch_precode.1} parent=80 // pred_region
          %s2142 = sand.u32 %s101, 1
          %s2143 = sand.u32 %s101, 1
          %s2144 = smul.addr %s2143, 336
          %s2145 = scalar_lea.vmem [#allocation3], %s2144
        $region85: #{pusch_precode.1} parent=80 // pred_fallthru
          _
      $region81: #{pusch_precode.1} parent=5 // pred_fallthru
        _
    $region6: #{pusch_precode.1} parent=1 // loop_footer
      %s12 = sadd.s32 1, %s8
    $region7: #{pusch_precode.1} parent=1 // loop_footer_branch
      %7 = sbr.rel target = $region3
    $region8: #{pusch_precode.1} parent=1 // loop_exit
      _

</llo_original>
